<compile_context>
chip_gen: v7x
topology: tpu7x:2x2x1
jax: 0.10.0
libtpu: 0.0.40
codegen_flags: <defaults>
</compile_context>

<pallas_src>
import functools

import jax
import jax.numpy as jnp
from jax.experimental import pallas as pl
from jax.experimental.pallas import tpu as pltpu


# -----------------------------------------------------------------------------
# Kernel: full per-batch-element forward pass, (C, N) layout
#   qkv 1x1-conv -> fused per-head softmaxes -> linear attention
#   -> out 1x1-conv (scale folded in) -> GroupNorm(1, dim)
# -----------------------------------------------------------------------------
def _linear_attention_kernel(x_ref, wq_ref, wk_ref, wv_ref, wout_ref, bout_ref,
                             gnw_ref, gnb_ref, mask_ref, o_ref,
                             *, heads, dim_head, eps, exp_bf16):
    hd = heads * dim_head
    c = x_ref.shape[-2]
    n = x_ref.shape[-1]
    ew_dtype = jnp.bfloat16 if exp_bf16 else jnp.float32

    # cast x once inside the kernel (no separate HBM convert op in the wrapper)
    x = x_ref[0].astype(jnp.bfloat16)                              # (C, N)

    # --- to_qkv: three separate 1x1-conv dots, bf16 operands, f32 accum ------
    q_all = jnp.dot(wq_ref[...], x, preferred_element_type=jnp.float32)  # (hd, N)
    k_all = jnp.dot(wk_ref[...], x, preferred_element_type=jnp.float32)  # (hd, N)
    v_all = jnp.dot(wv_ref[...], x, preferred_element_type=jnp.float32)  # (hd, N)

    # --- k: softmax over n (lane axis); denominator kept in f32 --------------
    km = jnp.max(k_all, axis=-1, keepdims=True)                    # (hd, 1)
    ke = jnp.exp((k_all - km).astype(ew_dtype))                    # (hd, N)
    ksum = jnp.sum(ke.astype(jnp.float32), axis=-1, keepdims=True)
    k_soft = (ke * pl.reciprocal(ksum, approx=True)).astype(jnp.bfloat16)

    v_bf = v_all.astype(jnp.bfloat16)

    # context[d, e] = sum_n k[d, n] * v[e, n]  (bf16 MXU operands, f32 accum)
    context = jax.lax.dot_general(
        k_soft, v_bf, (((1,), (1,)), ((), ())),
        preferred_element_type=jnp.float32)                        # (hd, hd)
    # zero cross-head 32x32 blocks (mask is a resident constant input)
    context = context * mask_ref[...]

    # --- q: softmax over d within each head (sublane-group reduction) --------
    q3 = q_all.reshape(heads, dim_head, n)                         # layout-free split
    qm = jnp.max(q3, axis=1, keepdims=True)                        # per-head max (stable)
    qe = jnp.exp((q3 - qm).astype(ew_dtype))                       # (heads, dim_head, N)
    qsum = jnp.sum(qe.astype(jnp.float32), axis=1, keepdims=True)  # (heads, 1, N), f32
    q_soft = (qe * pl.reciprocal(qsum, approx=True)).astype(jnp.bfloat16)
    q_soft = q_soft.reshape(hd, n)                                 # scale folded in Wout

    # out[e, n] = sum_d context[d, e] * q[d, n]  (bf16 MXU operands, f32 accum)
    out_full = jax.lax.dot_general(
        context.astype(jnp.bfloat16), q_soft, (((0,), (0,)), ((), ())),
        preferred_element_type=jnp.float32)                        # (hd, N)

    # --- to_out[0]: 1x1 conv with bias (bf16 operands, f32 accum) ------------
    y = jnp.dot(wout_ref[...], out_full.astype(jnp.bfloat16),
                preferred_element_type=jnp.float32)                # (C, N)
    y = y + bout_ref[...]                                          # (C, 1) broadcast

    # --- to_out[1]: GroupNorm(1, dim): one stats pass + one fused scale/shift
    cnt = float(c * n)
    s = jnp.sum(y)
    ss = jnp.sum(y * y)
    mean = s / cnt
    var = jnp.maximum(ss / cnt - mean * mean, 0.0)                 # biased variance
    inv = jax.lax.rsqrt(var + eps)
    scale = gnw_ref[...] * inv                                     # (C, 1)
    shift = gnb_ref[...] - mean * scale                            # (C, 1)

    # lane-dense store: last dim is N (multiple of 128)
    o_ref[0] = (y * scale + shift).astype(o_ref.dtype)


# -----------------------------------------------------------------------------
# Wrapper
# -----------------------------------------------------------------------------
def linear_attention_pallas(x_nchw, wqkv_conv, wout_conv, bout, gn_w, gn_b,
                            *, heads, dim_head, eps=1e-5):
    """x_nchw: (B, C, H, W) like PyTorch.  Returns (B, C, H, W)."""
    b, c, h, w = x_nchw.shape
    n = h * w
    hd = heads * dim_head
    scale = dim_head ** (-0.5)
    assert wqkv_conv.shape == (3 * hd, c)
    assert wout_conv.shape == (c, hd)

    # Per-generation knobs: bf16 exp only where the EUP has a bf16 path;
    # tighter VMEM cap on v7x (64 MiB physical) than on v5e/v6e (128 MiB).
    kind = ""
    try:
        kind = jax.devices()[0].device_kind.lower()
    except Exception:
        pass
    is_v5 = "v5" in kind
    is_v7 = ("v7" in kind) or ("7x" in kind)
    exp_bf16 = not is_v5
    vmem_limit = (48 if is_v7 else 100) * 1024 * 1024

    # NCHW -> (B, C, N): pure reshape, no transpose, no dtype convert (f32 in)
    x_cn = x_nchw.reshape(b, c, n)

    # 1x1-conv weights as left-multiplication matrices (bf16 MXU operands).
    # Split Wqkv into the three heads-fused projections; fold q scale into Wout.
    wq = wqkv_conv[0 * hd:1 * hd].astype(jnp.bfloat16)             # (hd, C)
    wk = wqkv_conv[1 * hd:2 * hd].astype(jnp.bfloat16)             # (hd, C)
    wv = wqkv_conv[2 * hd:3 * hd].astype(jnp.bfloat16)             # (hd, C)
    wout = (wout_conv * scale).astype(jnp.bfloat16)                # (C, hd)
    bout_r = bout.reshape(c, 1).astype(jnp.float32)
    gnw_r = gn_w.reshape(c, 1).astype(jnp.float32)
    gnb_r = gn_b.reshape(c, 1).astype(jnp.float32)

    # block-diagonal head mask, built once (hoisted out of the kernel body)
    head_id = jnp.arange(hd, dtype=jnp.int32) // dim_head
    head_mask = (head_id[:, None] == head_id[None, :]).astype(jnp.float32)

    kernel = functools.partial(
        _linear_attention_kernel,
        heads=heads, dim_head=dim_head, eps=eps, exp_bf16=exp_bf16,
    )

    # TODO(synk): for very large N (>= 128*128) on v7x (64 MiB VMEM), add an
    # N-tile grid axis with a two-pass / online scheme (pass 1: k-softmax stats,
    # context accumulation, GN sum/sum-sq; pass 2: q-softmax, out matmul,
    # projection, GN apply) to bound peak VMEM; the monolithic per-sample body
    # fits comfortably up to N ~ 64*64.
    out_cn = pl.pallas_call(
        kernel,
        out_shape=jax.ShapeDtypeStruct((b, c, n), x_nchw.dtype),
        grid=(b,),
        in_specs=[
            pl.BlockSpec((1, c, n), lambda i: (i, 0, 0)),          # x (per batch)
            pl.BlockSpec((hd, c), lambda i: (0, 0)),               # Wq
            pl.BlockSpec((hd, c), lambda i: (0, 0)),               # Wk
            pl.BlockSpec((hd, c), lambda i: (0, 0)),               # Wv
            pl.BlockSpec((c, hd), lambda i: (0, 0)),               # Wout * scale
            pl.BlockSpec((c, 1), lambda i: (0, 0)),                # out bias
            pl.BlockSpec((c, 1), lambda i: (0, 0)),                # GN weight
            pl.BlockSpec((c, 1), lambda i: (0, 0)),                # GN bias
            pl.BlockSpec((hd, hd), lambda i: (0, 0)),              # head mask
        ],
        out_specs=pl.BlockSpec((1, c, n), lambda i: (i, 0, 0)),
        compiler_params=pltpu.CompilerParams(
            dimension_semantics=("parallel",),
            vmem_limit_bytes=vmem_limit),
    )(x_cn, wq, wk, wv, wout, bout_r, gnw_r, gnb_r, head_mask)

    # (B, C, N) -> NCHW: pure reshape
    return out_cn.reshape(b, c, h, w)


# -----------------------------------------------------------------------------
# Pure-JAX reference (mirrors the PyTorch forward exactly, full f32)
# -----------------------------------------------------------------------------
def linear_attention_ref(x_nchw, wqkv_conv, wout_conv, bout, gn_w, gn_b,
                         *, heads, dim_head, eps=1e-5):
    b, c, h, w = x_nchw.shape
    hd = heads * dim_head
    scale = dim_head ** (-0.5)

    qkv = jnp.einsum('oc,bchw->bohw', wqkv_conv, x_nchw)
    q, k, v = jnp.split(qkv, 3, axis=1)
    rearr = lambda t: t.reshape(b, heads, dim_head, h * w)   # 'b (h c) x y -> b h c (x y)'
    q, k, v = map(rearr, (q, k, v))

    q = jax.nn.softmax(q, axis=-2) * scale
    k = jax.nn.softmax(k, axis=-1)
    context = jnp.einsum('bhdn,bhen->bhde', k, v)
    out = jnp.einsum('bhde,bhdn->bhen', context, q)
    out = out.reshape(b, hd, h, w)                           # 'b h c (x y) -> b (h c) x y'

    y = jnp.einsum('oc,bchw->bohw', wout_conv, out) + bout[None, :, None, None]
    mean = y.mean(axis=(1, 2, 3), keepdims=True)
    var = ((y - mean) ** 2).mean(axis=(1, 2, 3), keepdims=True)
    y = (y - mean) / jnp.sqrt(var + eps)
    return y * gn_w[None, :, None, None] + gn_b[None, :, None, None]


# -----------------------------------------------------------------------------
if __name__ == "__main__":
    # Module config (PyTorch defaults): dim=4, heads=4, dim_head=32
    dim, heads, dim_head = 4, 4, 32
    hidden = heads * dim_head
    B, H, W = 2, 16, 16

    key = jax.random.PRNGKey(0)
    kx, k1, k2, k3, k4, k5 = jax.random.split(key, 6)

    x = jax.random.normal(kx, (B, dim, H, W), dtype=jnp.float32)

    # Deterministic synthetic parameters (Conv2d 1x1 weights flattened to 2D).
    wqkv_conv = 0.1 * jax.random.normal(k1, (3 * hidden, dim), dtype=jnp.float32)
    wout_conv = 0.1 * jax.random.normal(k2, (dim, hidden), dtype=jnp.float32)
    bout = 0.1 * jax.random.normal(k3, (dim,), dtype=jnp.float32)
    gn_w = 1.0 + 0.1 * jax.random.normal(k4, (dim,), dtype=jnp.float32)
    gn_b = 0.1 * jax.random.normal(k5, (dim,), dtype=jnp.float32)

    out = linear_attention_pallas(x, wqkv_conv, wout_conv, bout, gn_w, gn_b,
                                  heads=heads, dim_head=dim_head)
    out = jax.block_until_ready(out)

    ref = linear_attention_ref(x, wqkv_conv, wout_conv, bout, gn_w, gn_b,
                               heads=heads, dim_head=dim_head)
    ref = jax.block_until_ready(ref)

    assert out.shape == (B, dim, H, W)
    # Tolerance accounts for bf16 MXU operands + bf16 exps + approx reciprocal;
    # softmax denominators, context mask, and GroupNorm statistics stay f32.
    assert jnp.allclose(out, ref, atol=5e-2, rtol=5e-2), (
        f"max abs diff = {jnp.max(jnp.abs(out - ref))}")

    print("KERNEL_OK")
</pallas_src>

<mosaic_0001>
module attributes {stable_mosaic.version = 11 : i64} {
  func.func @_linear_attention_kernel(%arg0: i32, %arg1: memref<1x4x256xf32, #tpu.memory_space<vmem>>, %arg2: memref<128x4xbf16, #tpu.memory_space<vmem>>, %arg3: memref<128x4xbf16, #tpu.memory_space<vmem>>, %arg4: memref<128x4xbf16, #tpu.memory_space<vmem>>, %arg5: memref<4x128xbf16, #tpu.memory_space<vmem>>, %arg6: memref<4x1xf32, #tpu.memory_space<vmem>>, %arg7: memref<4x1xf32, #tpu.memory_space<vmem>>, %arg8: memref<4x1xf32, #tpu.memory_space<vmem>>, %arg9: memref<128x128xf32, #tpu.memory_space<vmem>>, %arg10: memref<1x4x256xf32, #tpu.memory_space<vmem>>) attributes {dimension_semantics = [#tpu.dimension_semantics<parallel>], iteration_bounds = array<i64: 2>, scalar_prefetch = 0 : i64, scratch_operands = 0 : i64, tpu.core_type = #tpu.core_type<tc>, window_params = [{transform_indices = @transform_0, window_bounds = array<i64: 1, 4, 256>}, {pipeline_mode = #tpu.pipeline_mode<synchronous>, transform_indices = @transform_1, window_bounds = array<i64: 128, 4>}, {pipeline_mode = #tpu.pipeline_mode<synchronous>, transform_indices = @transform_2, window_bounds = array<i64: 128, 4>}, {pipeline_mode = #tpu.pipeline_mode<synchronous>, transform_indices = @transform_3, window_bounds = array<i64: 128, 4>}, {pipeline_mode = #tpu.pipeline_mode<synchronous>, transform_indices = @transform_4, window_bounds = array<i64: 4, 128>}, {pipeline_mode = #tpu.pipeline_mode<synchronous>, transform_indices = @transform_5, window_bounds = array<i64: 4, 1>}, {pipeline_mode = #tpu.pipeline_mode<synchronous>, transform_indices = @transform_6, window_bounds = array<i64: 4, 1>}, {pipeline_mode = #tpu.pipeline_mode<synchronous>, transform_indices = @transform_7, window_bounds = array<i64: 4, 1>}, {pipeline_mode = #tpu.pipeline_mode<synchronous>, transform_indices = @transform_8, window_bounds = array<i64: 128, 128>}, {transform_indices = @transform_9, window_bounds = array<i64: 1, 4, 256>}]} {
    %c0 = arith.constant 0 : index
    %c0_0 = arith.constant 0 : index
    %c0_1 = arith.constant 0 : index
    %0 = vector.load %arg1[%c0, %c0_0, %c0_1] : memref<1x4x256xf32, #tpu.memory_space<vmem>>, vector<1x4x256xf32>
    %1 = vector.shape_cast %0 : vector<1x4x256xf32> to vector<4x256xf32>
    %2 = arith.truncf %1 : vector<4x256xf32> to vector<4x256xbf16>
    %c0_2 = arith.constant 0 : index
    %c0_3 = arith.constant 0 : index
    %3 = vector.load %arg2[%c0_2, %c0_3] : memref<128x4xbf16, #tpu.memory_space<vmem>>, vector<128x4xbf16>
    %cst = arith.constant dense<0.000000e+00> : vector<128x256xf32>
    %4 = tpu.matmul %3, %2, %cst {dimension_numbers = #tpu.dot_dimension_numbers<[1], [0], [0], [1], [0, 0, 1, 1], [], []>} : vector<128x4xbf16>, vector<4x256xbf16>, vector<128x256xf32> -> vector<128x256xf32>
    %c0_4 = arith.constant 0 : index
    %c0_5 = arith.constant 0 : index
    %5 = vector.load %arg3[%c0_4, %c0_5] : memref<128x4xbf16, #tpu.memory_space<vmem>>, vector<128x4xbf16>
    %cst_6 = arith.constant dense<0.000000e+00> : vector<128x256xf32>
    %6 = tpu.matmul %5, %2, %cst_6 {dimension_numbers = #tpu.dot_dimension_numbers<[1], [0], [0], [1], [0, 0, 1, 1], [], []>} : vector<128x4xbf16>, vector<4x256xbf16>, vector<128x256xf32> -> vector<128x256xf32>
    %c0_7 = arith.constant 0 : index
    %c0_8 = arith.constant 0 : index
    %7 = vector.load %arg4[%c0_7, %c0_8] : memref<128x4xbf16, #tpu.memory_space<vmem>>, vector<128x4xbf16>
    %cst_9 = arith.constant dense<0.000000e+00> : vector<128x256xf32>
    %8 = tpu.matmul %7, %2, %cst_9 {dimension_numbers = #tpu.dot_dimension_numbers<[1], [0], [0], [1], [0, 0, 1, 1], [], []>} : vector<128x4xbf16>, vector<4x256xbf16>, vector<128x256xf32> -> vector<128x256xf32>
    %cst_10 = arith.constant dense<0xFF800000> : vector<128xf32>
    %9 = vector.multi_reduction <maximumf>, %6, %cst_10 [1] : vector<128x256xf32> to vector<128xf32>
    %10 = vector.shape_cast %9 : vector<128xf32> to vector<128x1xf32>
    %11 = vector.broadcast %10 : vector<128x1xf32> to vector<128x256xf32>
    %12 = arith.subf %6, %11 : vector<128x256xf32>
    %13 = arith.truncf %12 : vector<128x256xf32> to vector<128x256xbf16>
    %14 = math.exp %13 : vector<128x256xbf16>
    %15 = arith.extf %14 : vector<128x256xbf16> to vector<128x256xf32>
    %cst_11 = arith.constant dense<0.000000e+00> : vector<128xf32>
    %16 = vector.multi_reduction <add>, %15, %cst_11 [1] : vector<128x256xf32> to vector<128xf32>
    %17 = vector.shape_cast %16 : vector<128xf32> to vector<128x1xf32>
    %18 = tpu.reciprocal %17 {approx = true} : vector<128x1xf32> -> vector<128x1xf32>
    %19 = arith.extf %14 : vector<128x256xbf16> to vector<128x256xf32>
    %20 = vector.broadcast %18 : vector<128x1xf32> to vector<128x256xf32>
    %21 = arith.mulf %19, %20 : vector<128x256xf32>
    %22 = arith.truncf %21 : vector<128x256xf32> to vector<128x256xbf16>
    %23 = arith.truncf %8 : vector<128x256xf32> to vector<128x256xbf16>
    %cst_12 = arith.constant dense<0.000000e+00> : vector<128x128xf32>
    %24 = tpu.matmul %22, %23, %cst_12 {dimension_numbers = #tpu.dot_dimension_numbers<[1], [1], [0], [0], [0, 0, 1, 0], [], []>} : vector<128x256xbf16>, vector<128x256xbf16>, vector<128x128xf32> -> vector<128x128xf32>
    %c0_13 = arith.constant 0 : index
    %c0_14 = arith.constant 0 : index
    %25 = vector.load %arg9[%c0_13, %c0_14] : memref<128x128xf32, #tpu.memory_space<vmem>>, vector<128x128xf32>
    %26 = arith.mulf %24, %25 : vector<128x128xf32>
    %27 = vector.shape_cast %4 : vector<128x256xf32> to vector<4x32x256xf32>
    %cst_15 = arith.constant dense<0xFF800000> : vector<4x256xf32>
    %28 = vector.multi_reduction <maximumf>, %27, %cst_15 [1] : vector<4x32x256xf32> to vector<4x256xf32>
    %29 = vector.shape_cast %28 : vector<4x256xf32> to vector<4x1x256xf32>
    %30 = vector.broadcast %29 : vector<4x1x256xf32> to vector<4x32x256xf32>
    %31 = arith.subf %27, %30 : vector<4x32x256xf32>
    %32 = arith.truncf %31 : vector<4x32x256xf32> to vector<4x32x256xbf16>
    %33 = math.exp %32 : vector<4x32x256xbf16>
    %34 = arith.extf %33 : vector<4x32x256xbf16> to vector<4x32x256xf32>
    %cst_16 = arith.constant dense<0.000000e+00> : vector<4x256xf32>
    %35 = vector.multi_reduction <add>, %34, %cst_16 [1] : vector<4x32x256xf32> to vector<4x256xf32>
    %36 = vector.shape_cast %35 : vector<4x256xf32> to vector<4x1x256xf32>
    %37 = tpu.reciprocal %36 {approx = true} : vector<4x1x256xf32> -> vector<4x1x256xf32>
    %38 = arith.extf %33 : vector<4x32x256xbf16> to vector<4x32x256xf32>
    %39 = vector.broadcast %37 : vector<4x1x256xf32> to vector<4x32x256xf32>
    %40 = arith.mulf %38, %39 : vector<4x32x256xf32>
    %41 = arith.truncf %40 : vector<4x32x256xf32> to vector<4x32x256xbf16>
    %42 = vector.shape_cast %41 : vector<4x32x256xbf16> to vector<128x256xbf16>
    %43 = arith.truncf %26 : vector<128x128xf32> to vector<128x128xbf16>
    %cst_17 = arith.constant dense<0.000000e+00> : vector<128x256xf32>
    %44 = tpu.matmul %43, %42, %cst_17 {dimension_numbers = #tpu.dot_dimension_numbers<[0], [0], [1], [1], [0, 1, 1, 1], [], []>} : vector<128x128xbf16>, vector<128x256xbf16>, vector<128x256xf32> -> vector<128x256xf32>
    %c0_18 = arith.constant 0 : index
    %c0_19 = arith.constant 0 : index
    %45 = vector.load %arg5[%c0_18, %c0_19] : memref<4x128xbf16, #tpu.memory_space<vmem>>, vector<4x128xbf16>
    %46 = arith.truncf %44 : vector<128x256xf32> to vector<128x256xbf16>
    %cst_20 = arith.constant dense<0.000000e+00> : vector<4x256xf32>
    %47 = tpu.matmul %45, %46, %cst_20 {dimension_numbers = #tpu.dot_dimension_numbers<[1], [0], [0], [1], [0, 0, 1, 1], [], []>} : vector<4x128xbf16>, vector<128x256xbf16>, vector<4x256xf32> -> vector<4x256xf32>
    %c0_21 = arith.constant 0 : index
    %c0_22 = arith.constant 0 : index
    %48 = vector.load %arg6[%c0_21, %c0_22] : memref<4x1xf32, #tpu.memory_space<vmem>>, vector<4x1xf32>
    %49 = vector.broadcast %48 : vector<4x1xf32> to vector<4x256xf32>
    %50 = arith.addf %47, %49 : vector<4x256xf32>
    %51 = vector.shape_cast %50 : vector<4x256xf32> to vector<1x4x256xf32>
    %cst_23 = arith.constant dense<0.000000e+00> : vector<1xf32>
    %52 = vector.multi_reduction <add>, %51, %cst_23 [1, 2] : vector<1x4x256xf32> to vector<1xf32>
    %53 = vector.shape_cast %52 : vector<1xf32> to vector<1x1x1xf32>
    %54 = vector.extract %53[0, 0, 0] : f32 from vector<1x1x1xf32>
    %55 = arith.mulf %50, %50 : vector<4x256xf32>
    %56 = vector.shape_cast %55 : vector<4x256xf32> to vector<1x4x256xf32>
    %cst_24 = arith.constant dense<0.000000e+00> : vector<1xf32>
    %57 = vector.multi_reduction <add>, %56, %cst_24 [1, 2] : vector<1x4x256xf32> to vector<1xf32>
    %58 = vector.shape_cast %57 : vector<1xf32> to vector<1x1x1xf32>
    %59 = vector.extract %58[0, 0, 0] : f32 from vector<1x1x1xf32>
    %cst_25 = arith.constant 1.024000e+03 : f32
    %60 = arith.divf %54, %cst_25 : f32
    %cst_26 = arith.constant 1.024000e+03 : f32
    %61 = arith.divf %59, %cst_26 : f32
    %62 = arith.mulf %60, %60 : f32
    %63 = arith.subf %61, %62 : f32
    %cst_27 = arith.constant 0.000000e+00 : f32
    %64 = arith.maximumf %63, %cst_27 : f32
    %cst_28 = arith.constant 9.99999974E-6 : f32
    %65 = arith.addf %64, %cst_28 : f32
    %66 = math.rsqrt %65 : f32
    %c0_29 = arith.constant 0 : index
    %c0_30 = arith.constant 0 : index
    %67 = vector.load %arg7[%c0_29, %c0_30] : memref<4x1xf32, #tpu.memory_space<vmem>>, vector<4x1xf32>
    %68 = vector.broadcast %66 : f32 to vector<4x1xf32>
    %69 = arith.mulf %67, %68 : vector<4x1xf32>
    %c0_31 = arith.constant 0 : index
    %c0_32 = arith.constant 0 : index
    %70 = vector.load %arg8[%c0_31, %c0_32] : memref<4x1xf32, #tpu.memory_space<vmem>>, vector<4x1xf32>
    %71 = vector.broadcast %60 : f32 to vector<4x1xf32>
    %72 = arith.mulf %71, %69 : vector<4x1xf32>
    %73 = arith.subf %70, %72 : vector<4x1xf32>
    %74 = vector.broadcast %69 : vector<4x1xf32> to vector<4x256xf32>
    %75 = arith.mulf %50, %74 : vector<4x256xf32>
    %76 = vector.broadcast %73 : vector<4x1xf32> to vector<4x256xf32>
    %77 = arith.addf %75, %76 : vector<4x256xf32>
    %c0_33 = arith.constant 0 : index
    %c0_34 = arith.constant 0 : index
    %c0_35 = arith.constant 0 : index
    %78 = vector.load %arg10[%c0_33, %c0_34, %c0_35] : memref<1x4x256xf32, #tpu.memory_space<vmem>>, vector<1x4x256xf32>
    %79 = vector.shape_cast %78 : vector<1x4x256xf32> to vector<4x256xf32>
    %80 = vector.shape_cast %77 : vector<4x256xf32> to vector<1x4x256xf32>
    tpu.vector_store %arg10[%c0_33, %c0_34, %c0_35], %80 {strides = array<i32>} : memref<1x4x256xf32, #tpu.memory_space<vmem>>, vector<1x4x256xf32>,
    return
  }
  func.func @transform_0(%arg0: i32) -> (i32, i32, i32) {
    %c0_i32 = arith.constant 0 : i32
    %c0_i32_0 = arith.constant 0 : i32
    %c0_i32_1 = arith.constant 0 : i32
    return %arg0, %c0_i32, %c0_i32_0 : i32, i32, i32
  }
  func.func @transform_1(%arg0: i32) -> (i32, i32) {
    %c0_i32 = arith.constant 0 : i32
    %c0_i32_0 = arith.constant 0 : i32
    %c0_i32_1 = arith.constant 0 : i32
    return %c0_i32, %c0_i32_0 : i32, i32
  }
  func.func @transform_2(%arg0: i32) -> (i32, i32) {
    %c0_i32 = arith.constant 0 : i32
    %c0_i32_0 = arith.constant 0 : i32
    %c0_i32_1 = arith.constant 0 : i32
    return %c0_i32, %c0_i32_0 : i32, i32
  }
  func.func @transform_3(%arg0: i32) -> (i32, i32) {
    %c0_i32 = arith.constant 0 : i32
    %c0_i32_0 = arith.constant 0 : i32
    %c0_i32_1 = arith.constant 0 : i32
    return %c0_i32, %c0_i32_0 : i32, i32
  }
  func.func @transform_4(%arg0: i32) -> (i32, i32) {
    %c0_i32 = arith.constant 0 : i32
    %c0_i32_0 = arith.constant 0 : i32
    %c0_i32_1 = arith.constant 0 : i32
    return %c0_i32, %c0_i32_0 : i32, i32
  }
  func.func @transform_5(%arg0: i32) -> (i32, i32) {
    %c0_i32 = arith.constant 0 : i32
    %c0_i32_0 = arith.constant 0 : i32
    %c0_i32_1 = arith.constant 0 : i32
    return %c0_i32, %c0_i32_0 : i32, i32
  }
  func.func @transform_6(%arg0: i32) -> (i32, i32) {
    %c0_i32 = arith.constant 0 : i32
    %c0_i32_0 = arith.constant 0 : i32
    %c0_i32_1 = arith.constant 0 : i32
    return %c0_i32, %c0_i32_0 : i32, i32
  }
  func.func @transform_7(%arg0: i32) -> (i32, i32) {
    %c0_i32 = arith.constant 0 : i32
    %c0_i32_0 = arith.constant 0 : i32
    %c0_i32_1 = arith.constant 0 : i32
    return %c0_i32, %c0_i32_0 : i32, i32
  }
  func.func @transform_8(%arg0: i32) -> (i32, i32) {
    %c0_i32 = arith.constant 0 : i32
    %c0_i32_0 = arith.constant 0 : i32
    %c0_i32_1 = arith.constant 0 : i32
    return %c0_i32, %c0_i32_0 : i32, i32
  }
  func.func @transform_9(%arg0: i32) -> (i32, i32, i32) {
    %c0_i32 = arith.constant 0 : i32
    %c0_i32_0 = arith.constant 0 : i32
    %c0_i32_1 = arith.constant 0 : i32
    return %arg0, %c0_i32, %c0_i32_0 : i32, i32, i32
  }
}

</mosaic_0001>

<llo_original>
// kernel: tpu_custom_call.1
$region0: #{tpu_custom_call.1}
  #allocation0 [shape = 'u32[]', space=smem, size = 0x4, offset = 0x4, fixed_abs, tag = 'smem constant byte address 0x4 - core index']
  #allocation1 [shape = 'u32[144,128]{1,0:T(1,128)}', space=vmem, size = 0x12000, scoped, tag = 'internal scratch']
  %s0 = inlined_call_operand.hbm [shape: f32[2,4,256], index: 0, kind: input, shape index: {}]
  %s1 = inlined_call_operand.hbm [shape: bf16[128,4], index: 1, kind: input, shape index: {}]
  %s2 = inlined_call_operand.hbm [shape: bf16[128,4], index: 2, kind: input, shape index: {}]
  %s3 = inlined_call_operand.hbm [shape: bf16[128,4], index: 3, kind: input, shape index: {}]
  %s4 = inlined_call_operand.hbm [shape: bf16[4,128], index: 4, kind: input, shape index: {}]
  %s5 = inlined_call_operand.hbm [shape: f32[4,1], index: 5, kind: input, shape index: {}]
  %s6 = inlined_call_operand.hbm [shape: f32[4,1], index: 6, kind: input, shape index: {}]
  %s7 = inlined_call_operand.hbm [shape: f32[4,1], index: 7, kind: input, shape index: {}]
  %s8 = inlined_call_operand.hbm [shape: f32[128,128], index: 8, kind: input, shape index: {}]
  %s9 = inlined_call_operand.hbm [shape: f32[2,4,256], index: 9, kind: output, shape index: {}]
  %s10 = sld [smem:[#allocation0]]
  $region105: #{tpu_custom_call.1} parent=0
    _
  %s12 = ssub.s32 1, %s10
  %s13 = scalar_select 0, %s12, %s10
  $region1: #{tpu_custom_call.1} parent=0
    #allocation2 [shape = 'u8[8192]{0}', space=vmem, size = 0x2000, scoped, tag = 'input window, operand 0']
    #allocation3 [shape = 's32[2]{0}', space=sflag, size = 0x8, scoped, tag = 'scoped memory for tpu_custom_call.1']
    #allocation4 [shape = 's32[2]{0}', space=sflag, size = 0x8, scoped, tag = 'scoped memory for tpu_custom_call.1']
    #allocation5 [shape = 'u8[32768]{0}', space=vmem, size = 0x8000, scoped, tag = 'input window, operand 1, single buffered']
    #allocation6 [shape = 's32[1]{0}', space=sflag, size = 0x4, scoped, tag = 'scoped memory for tpu_custom_call.1']
    #allocation7 [shape = 'u8[32768]{0}', space=vmem, size = 0x8000, scoped, tag = 'input window, operand 2, single buffered']
    #allocation8 [shape = 'u8[32768]{0}', space=vmem, size = 0x8000, scoped, tag = 'input window, operand 3, single buffered']
    #allocation9 [shape = 's32[1]{0}', space=sflag, size = 0x4, scoped, tag = 'scoped memory for tpu_custom_call.1']
    #allocation10 [shape = 'u8[1024]{0}', space=vmem, size = 0x400, scoped, tag = 'input window, operand 4, single buffered']
    #allocation11 [shape = 'u8[2048]{0}', space=vmem, size = 0x800, scoped, tag = 'input window, operand 5, single buffered']
    #allocation12 [shape = 's32[1]{0}', space=sflag, size = 0x4, scoped, tag = 'scoped memory for tpu_custom_call.1']
    #allocation13 [shape = 'u8[2048]{0}', space=vmem, size = 0x800, scoped, tag = 'input window, operand 6, single buffered']
    #allocation14 [shape = 'u8[2048]{0}', space=vmem, size = 0x800, scoped, tag = 'input window, operand 7, single buffered']
    #allocation15 [shape = 's32[1]{0}', space=sflag, size = 0x4, scoped, tag = 'scoped memory for tpu_custom_call.1']
    #allocation16 [shape = 'u8[65536]{0}', space=vmem, size = 0x10000, scoped, tag = 'input window, operand 8, single buffered']
    #allocation17 [shape = 'u8[8192]{0}', space=vmem, size = 0x2000, scoped, tag = 'output window, operand 0']
    %14 = vsyncpa [#allocation3], 0
    %s15 = scalar_lea.sflag [#allocation3], 1
    %16 = vsyncpa %s15, 0
    %17 = vsyncpa [#allocation6], 0
    %18 = vsyncpa [#allocation9], 0
    %19 = vsyncpa [#allocation12], 0
    %20 = vsyncpa [#allocation15], 0
    %21 = vsyncpa [#allocation4], 0
    %s22 = scalar_lea.sflag [#allocation4], 1
    %23 = vsyncpa %s22, 0
    loop: start=0, step=1, limit=4
    $region2: #{tpu_custom_call.1} parent=1 // loop_pre_header
      _
    $region3: #{tpu_custom_call.1} parent=1 // loop_header
      %s25 = sphi 0, %s29
      %p26 = scmp.ge.s32.totalorder %s25, 4
      %s35 = sphi 0, %s37
      %s38 = sphi 0, %s35
      %s39 = sphi 0, %s38
      %s55 = sphi 0, %s39
      %s59 = sphi 0, %s59
      %s61 = sphi 0, %s59
      %s62 = sphi 0, %s61
      %s76 = sphi 0, %s62
      %s80 = sphi 0, %s80
      %s82 = sphi 0, %s80
      %s83 = sphi 0, %s82
      %s97 = sphi 0, %s83
      %s101 = sphi 0, %s101
      %s103 = sphi 0, %s101
      %s104 = sphi 0, %s103
      %s118 = sphi 0, %s104
      %s122 = sphi 0, %s122
      %s124 = sphi 0, %s122
      %s125 = sphi 0, %s124
      %s139 = sphi 0, %s125
      %s143 = sphi 0, %s143
      %s145 = sphi 0, %s143
      %s146 = sphi 0, %s145
      %s160 = sphi 0, %s146
      %s164 = sphi 0, %s164
      %s166 = sphi 0, %s164
      %s167 = sphi 0, %s166
      %s181 = sphi 0, %s167
      %s185 = sphi 0, %s185
      %s187 = sphi 0, %s185
      %s188 = sphi 0, %s187
      %s202 = sphi 0, %s188
      %s206 = sphi 0, %s206
      %s208 = sphi 0, %s206
      %s209 = sphi 0, %s208
      %s223 = sphi 0, %s209
      %s229 = sphi 0, %s231
      %s232 = sphi 0, %s229
      %s233 = sphi 0, %s232
      %s249 = sphi 0, %s233
    $region4: #{tpu_custom_call.1} parent=1 // loop_header_branch
      %28 = sbr.rel (%p26) target = $region8
    $region5: #{tpu_custom_call.1} parent=1 // loop_body
      %s30 = ssub.s32 %s25, 1
      %s31 = ssub.s32 %s25, 2
      %s32 = sadd.s32 %s25, 1
      %s33 = ssub.s32 %s25, %s32
      %p34 = scmp.eq.s32.totalorder %s33, 0
      %s36 = sadd.s32 %s35, 1
      %s37 = scalar_select %p34, %s35, %s36
      %p40 = pneg %p34
      %p41 = scmp.eq.s32.totalorder %s25, 1
      %p42 = por %p40, %p41
      %p43 = scmp.ne.s32.totalorder %s35, %s38
      %p44 = scmp.eq.s32.totalorder %s25, 0
      %p45 = por %p43, %p44
      %p46 = scmp.ne.s32.totalorder %s35, %s38
      %p47 = scmp.eq.s32.totalorder %s30, 1
      %p48 = por %p46, %p47
      %p49 = scmp.ne.s32.totalorder %s38, %s39
      %p50 = scmp.eq.s32.totalorder %s30, 0
      %p51 = por %p49, %p50
      %p52 = scmp.ne.s32.totalorder %s38, %s39
      %p53 = scmp.eq.s32.totalorder %s31, 1
      %p54 = por %p52, %p53
      %p56 = scmp.ne.s32.totalorder %s39, %s55
      %p57 = scmp.eq.s32.totalorder %s31, 0
      %p58 = por %p56, %p57
      %s60 = sadd.s32 %s59, 1
      %p63 = scmp.eq.s32.totalorder %s25, 1
      %p64 = scmp.ne.s32.totalorder %s59, %s61
      %p65 = scmp.eq.s32.totalorder %s25, 0
      %p66 = por %p64, %p65
      %p67 = scmp.ne.s32.totalorder %s59, %s61
      %p68 = scmp.eq.s32.totalorder %s30, 1
      %p69 = por %p67, %p68
      %p70 = scmp.ne.s32.totalorder %s61, %s62
      %p71 = scmp.eq.s32.totalorder %s30, 0
      %p72 = por %p70, %p71
      %p73 = scmp.ne.s32.totalorder %s61, %s62
      %p74 = scmp.eq.s32.totalorder %s31, 1
      %p75 = por %p73, %p74
      %p77 = scmp.ne.s32.totalorder %s62, %s76
      %p78 = scmp.eq.s32.totalorder %s31, 0
      %p79 = por %p77, %p78
      %s81 = sadd.s32 %s80, 1
      %p84 = scmp.eq.s32.totalorder %s25, 1
      %p85 = scmp.ne.s32.totalorder %s80, %s82
      %p86 = scmp.eq.s32.totalorder %s25, 0
      %p87 = por %p85, %p86
      %p88 = scmp.ne.s32.totalorder %s80, %s82
      %p89 = scmp.eq.s32.totalorder %s30, 1
      %p90 = por %p88, %p89
      %p91 = scmp.ne.s32.totalorder %s82, %s83
      %p92 = scmp.eq.s32.totalorder %s30, 0
      %p93 = por %p91, %p92
      %p94 = scmp.ne.s32.totalorder %s82, %s83
      %p95 = scmp.eq.s32.totalorder %s31, 1
      %p96 = por %p94, %p95
      %p98 = scmp.ne.s32.totalorder %s83, %s97
      %p99 = scmp.eq.s32.totalorder %s31, 0
      %p100 = por %p98, %p99
      %s102 = sadd.s32 %s101, 1
      %p105 = scmp.eq.s32.totalorder %s25, 1
      %p106 = scmp.ne.s32.totalorder %s101, %s103
      %p107 = scmp.eq.s32.totalorder %s25, 0
      %p108 = por %p106, %p107
      %p109 = scmp.ne.s32.totalorder %s101, %s103
      %p110 = scmp.eq.s32.totalorder %s30, 1
      %p111 = por %p109, %p110
      %p112 = scmp.ne.s32.totalorder %s103, %s104
      %p113 = scmp.eq.s32.totalorder %s30, 0
      %p114 = por %p112, %p113
      %p115 = scmp.ne.s32.totalorder %s103, %s104
      %p116 = scmp.eq.s32.totalorder %s31, 1
      %p117 = por %p115, %p116
      %p119 = scmp.ne.s32.totalorder %s104, %s118
      %p120 = scmp.eq.s32.totalorder %s31, 0
      %p121 = por %p119, %p120
      %s123 = sadd.s32 %s122, 1
      %p126 = scmp.eq.s32.totalorder %s25, 1
      %p127 = scmp.ne.s32.totalorder %s122, %s124
      %p128 = scmp.eq.s32.totalorder %s25, 0
      %p129 = por %p127, %p128
      %p130 = scmp.ne.s32.totalorder %s122, %s124
      %p131 = scmp.eq.s32.totalorder %s30, 1
      %p132 = por %p130, %p131
      %p133 = scmp.ne.s32.totalorder %s124, %s125
      %p134 = scmp.eq.s32.totalorder %s30, 0
      %p135 = por %p133, %p134
      %p136 = scmp.ne.s32.totalorder %s124, %s125
      %p137 = scmp.eq.s32.totalorder %s31, 1
      %p138 = por %p136, %p137
      %p140 = scmp.ne.s32.totalorder %s125, %s139
      %p141 = scmp.eq.s32.totalorder %s31, 0
      %p142 = por %p140, %p141
      %s144 = sadd.s32 %s143, 1
      %p147 = scmp.eq.s32.totalorder %s25, 1
      %p148 = scmp.ne.s32.totalorder %s143, %s145
      %p149 = scmp.eq.s32.totalorder %s25, 0
      %p150 = por %p148, %p149
      %p151 = scmp.ne.s32.totalorder %s143, %s145
      %p152 = scmp.eq.s32.totalorder %s30, 1
      %p153 = por %p151, %p152
      %p154 = scmp.ne.s32.totalorder %s145, %s146
      %p155 = scmp.eq.s32.totalorder %s30, 0
      %p156 = por %p154, %p155
      %p157 = scmp.ne.s32.totalorder %s145, %s146
      %p158 = scmp.eq.s32.totalorder %s31, 1
      %p159 = por %p157, %p158
      %p161 = scmp.ne.s32.totalorder %s146, %s160
      %p162 = scmp.eq.s32.totalorder %s31, 0
      %p163 = por %p161, %p162
      %s165 = sadd.s32 %s164, 1
      %p168 = scmp.eq.s32.totalorder %s25, 1
      %p169 = scmp.ne.s32.totalorder %s164, %s166
      %p170 = scmp.eq.s32.totalorder %s25, 0
      %p171 = por %p169, %p170
      %p172 = scmp.ne.s32.totalorder %s164, %s166
      %p173 = scmp.eq.s32.totalorder %s30, 1
      %p174 = por %p172, %p173
      %p175 = scmp.ne.s32.totalorder %s166, %s167
      %p176 = scmp.eq.s32.totalorder %s30, 0
      %p177 = por %p175, %p176
      %p178 = scmp.ne.s32.totalorder %s166, %s167
      %p179 = scmp.eq.s32.totalorder %s31, 1
      %p180 = por %p178, %p179
      %p182 = scmp.ne.s32.totalorder %s167, %s181
      %p183 = scmp.eq.s32.totalorder %s31, 0
      %p184 = por %p182, %p183
      %s186 = sadd.s32 %s185, 1
      %p189 = scmp.eq.s32.totalorder %s25, 1
      %p190 = scmp.ne.s32.totalorder %s185, %s187
      %p191 = scmp.eq.s32.totalorder %s25, 0
      %p192 = por %p190, %p191
      %p193 = scmp.ne.s32.totalorder %s185, %s187
      %p194 = scmp.eq.s32.totalorder %s30, 1
      %p195 = por %p193, %p194
      %p196 = scmp.ne.s32.totalorder %s187, %s188
      %p197 = scmp.eq.s32.totalorder %s30, 0
      %p198 = por %p196, %p197
      %p199 = scmp.ne.s32.totalorder %s187, %s188
      %p200 = scmp.eq.s32.totalorder %s31, 1
      %p201 = por %p199, %p200
      %p203 = scmp.ne.s32.totalorder %s188, %s202
      %p204 = scmp.eq.s32.totalorder %s31, 0
      %p205 = por %p203, %p204
      %s207 = sadd.s32 %s206, 1
      %p210 = scmp.eq.s32.totalorder %s25, 1
      %p211 = scmp.ne.s32.totalorder %s206, %s208
      %p212 = scmp.eq.s32.totalorder %s25, 0
      %p213 = por %p211, %p212
      %p214 = scmp.ne.s32.totalorder %s206, %s208
      %p215 = scmp.eq.s32.totalorder %s30, 1
      %p216 = por %p214, %p215
      %p217 = scmp.ne.s32.totalorder %s208, %s209
      %p218 = scmp.eq.s32.totalorder %s30, 0
      %p219 = por %p217, %p218
      %p220 = scmp.ne.s32.totalorder %s208, %s209
      %p221 = scmp.eq.s32.totalorder %s31, 1
      %p222 = por %p220, %p221
      %p224 = scmp.ne.s32.totalorder %s209, %s223
      %p225 = scmp.eq.s32.totalorder %s31, 0
      %p226 = por %p224, %p225
      %s227 = ssub.s32 %s25, %s32
      %p228 = scmp.eq.s32.totalorder %s227, 0
      %s230 = sadd.s32 %s229, 1
      %s231 = scalar_select %p228, %s229, %s230
      %p234 = pneg %p228
      %p235 = scmp.eq.s32.totalorder %s25, 1
      %p236 = por %p234, %p235
      %p237 = scmp.ne.s32.totalorder %s229, %s232
      %p238 = scmp.eq.s32.totalorder %s25, 0
      %p239 = por %p237, %p238
      %p240 = scmp.ne.s32.totalorder %s229, %s232
      %p241 = scmp.eq.s32.totalorder %s30, 1
      %p242 = por %p240, %p241
      %p243 = scmp.ne.s32.totalorder %s232, %s233
      %p244 = scmp.eq.s32.totalorder %s30, 0
      %p245 = por %p243, %p244
      %p246 = scmp.ne.s32.totalorder %s232, %s233
      %p247 = scmp.eq.s32.totalorder %s31, 1
      %p248 = por %p246, %p247
      %p250 = scmp.ne.s32.totalorder %s233, %s249
      %p251 = scmp.eq.s32.totalorder %s31, 0
      %p252 = por %p250, %p251
      %p253 = scmp.le.s32.totalorder 1, %s25
      %p254 = scmp.lt.s32.totalorder %s25, 3
      %p255 = pnand %p253, %p254
      %p256 = pneg %p255
      // Predicated region
      $region9: #{tpu_custom_call.1} parent=5 // pred_check
        _
      $region10: #{tpu_custom_call.1} parent=5 // pred_check_branch
        %258 = sbr.rel (%p255) target = $region12
      $region11: #{tpu_custom_call.1} parent=5 // pred_region
        %s259 = ssub.s32 %s25, 1
        // Predicated region
        $region13: #{tpu_custom_call.1} parent=11 // pred_check
          %p260 = pneg %p72
        $region14: #{tpu_custom_call.1} parent=11 // pred_check_branch
          %262 = sbr.rel (%p260) target = $region16
        $region15: #{tpu_custom_call.1} parent=11 // pred_region
          %s264 = ssub.s32 1024, 1024
          %265 = vsyncadd [#allocation6], %s264
          %s266 = sshll.u32 [#allocation5], 4
          %s267 = int_to_ptr.vmem [resolvable:$true] %s266
          %272 = dma.hbm_to_vmem [thread:$0]  %s1, 1024, %s267, [#allocation6], 64, 64, 4
        $region16: #{tpu_custom_call.1} parent=11 // pred_fallthru
          _
        // Predicated region
        $region17: #{tpu_custom_call.1} parent=11 // pred_check
          %p273 = pneg %p93
        $region18: #{tpu_custom_call.1} parent=11 // pred_check_branch
          %275 = sbr.rel (%p273) target = $region20
        $region19: #{tpu_custom_call.1} parent=11 // pred_region
          %s277 = ssub.s32 1024, 1024
          %278 = vsyncadd [#allocation6], %s277
          %s279 = sshll.u32 [#allocation7], 4
          %s280 = int_to_ptr.vmem [resolvable:$true] %s279
          %285 = dma.hbm_to_vmem [thread:$0]  %s2, 1024, %s280, [#allocation6], 64, 64, 4
        $region20: #{tpu_custom_call.1} parent=11 // pred_fallthru
          _
        // Predicated region
        $region21: #{tpu_custom_call.1} parent=11 // pred_check
          %p286 = pneg %p114
        $region22: #{tpu_custom_call.1} parent=11 // pred_check_branch
          %288 = sbr.rel (%p286) target = $region24
        $region23: #{tpu_custom_call.1} parent=11 // pred_region
          %s290 = ssub.s32 1024, 1024
          %291 = vsyncadd [#allocation9], %s290
          %s292 = sshll.u32 [#allocation8], 4
          %s293 = int_to_ptr.vmem [resolvable:$true] %s292
          %298 = dma.hbm_to_vmem [thread:$0]  %s3, 1024, %s293, [#allocation9], 64, 64, 4
        $region24: #{tpu_custom_call.1} parent=11 // pred_fallthru
          _
        // Predicated region
        $region25: #{tpu_custom_call.1} parent=11 // pred_check
          %p299 = pneg %p135
        $region26: #{tpu_custom_call.1} parent=11 // pred_check_branch
          %301 = sbr.rel (%p299) target = $region28
        $region27: #{tpu_custom_call.1} parent=11 // pred_region
          %s303 = ssub.s32 32, 32
          %304 = vsyncadd [#allocation9], %s303
          %s306 = sshll.u32 [#allocation10], 4
          %s307 = int_to_ptr.vmem [resolvable:$true] %s306
          %309 = dma.hbm_to_vmem [thread:$0]  %s4, 32, %s307, [#allocation9]
        $region28: #{tpu_custom_call.1} parent=11 // pred_fallthru
          _
        // Predicated region
        $region29: #{tpu_custom_call.1} parent=11 // pred_check
          %p310 = pneg %p156
        $region30: #{tpu_custom_call.1} parent=11 // pred_check_branch
          %312 = sbr.rel (%p310) target = $region32
        $region31: #{tpu_custom_call.1} parent=11 // pred_region
          %s314 = ssub.s32 64, 64
          %315 = vsyncadd [#allocation12], %s314
          %s317 = sshll.u32 [#allocation11], 4
          %s318 = int_to_ptr.vmem [resolvable:$true] %s317
          %320 = dma.hbm_to_vmem [thread:$0]  %s5, 64, %s318, [#allocation12]
        $region32: #{tpu_custom_call.1} parent=11 // pred_fallthru
          _
        // Predicated region
        $region33: #{tpu_custom_call.1} parent=11 // pred_check
          %p321 = pneg %p177
        $region34: #{tpu_custom_call.1} parent=11 // pred_check_branch
          %323 = sbr.rel (%p321) target = $region36
        $region35: #{tpu_custom_call.1} parent=11 // pred_region
          %s325 = ssub.s32 64, 64
          %326 = vsyncadd [#allocation12], %s325
          %s328 = sshll.u32 [#allocation13], 4
          %s329 = int_to_ptr.vmem [resolvable:$true] %s328
          %331 = dma.hbm_to_vmem [thread:$0]  %s6, 64, %s329, [#allocation12]
        $region36: #{tpu_custom_call.1} parent=11 // pred_fallthru
          _
        // Predicated region
        $region37: #{tpu_custom_call.1} parent=11 // pred_check
          %p332 = pneg %p198
        $region38: #{tpu_custom_call.1} parent=11 // pred_check_branch
          %334 = sbr.rel (%p332) target = $region40
        $region39: #{tpu_custom_call.1} parent=11 // pred_region
          %s336 = ssub.s32 64, 64
          %337 = vsyncadd [#allocation15], %s336
          %s339 = sshll.u32 [#allocation14], 4
          %s340 = int_to_ptr.vmem [resolvable:$true] %s339
          %342 = dma.hbm_to_vmem [thread:$0]  %s7, 64, %s340, [#allocation15]
        $region40: #{tpu_custom_call.1} parent=11 // pred_fallthru
          _
        // Predicated region
        $region41: #{tpu_custom_call.1} parent=11 // pred_check
          %p343 = pneg %p219
        $region42: #{tpu_custom_call.1} parent=11 // pred_check_branch
          %345 = sbr.rel (%p343) target = $region44
        $region43: #{tpu_custom_call.1} parent=11 // pred_region
          %s347 = ssub.s32 2048, 2048
          %348 = vsyncadd [#allocation15], %s347
          %s349 = sshll.u32 [#allocation16], 4
          %s350 = int_to_ptr.vmem [resolvable:$true] %s349
          %355 = dma.hbm_to_vmem [thread:$0]  %s8, 2048, %s350, [#allocation15], 128, 128, 8
        $region44: #{tpu_custom_call.1} parent=11 // pred_fallthru
          _
      $region12: #{tpu_custom_call.1} parent=5 // pred_fallthru
        _
      %p356 = scmp.lt.s32.totalorder %s25, 2
      // Predicated region
      $region45: #{tpu_custom_call.1} parent=5 // pred_check
        %p357 = pneg %p356
      $region46: #{tpu_custom_call.1} parent=5 // pred_check_branch
        %359 = sbr.rel (%p357) target = $region48
      $region47: #{tpu_custom_call.1} parent=5 // pred_region
        // Predicated region
        $region49: #{tpu_custom_call.1} parent=47 // pred_check
          %p360 = pneg %p45
        $region50: #{tpu_custom_call.1} parent=47 // pred_check_branch
          %362 = sbr.rel (%p360) target = $region52
        $region51: #{tpu_custom_call.1} parent=47 // pred_region
          %s363 = sand.u32 %s35, 1
          %s364 = scalar_lea.sflag [#allocation3], %s363
          %s365 = sand.u32 %s35, 1
          %s366 = smul.addr %s365, 8
          %s367 = scalar_lea.vmem [#allocation2], %s366
          %s369 = ssub.s32 128, 128
          %370 = vsyncadd %s364, %s369
          %s371 = smul.addr %s25, 2
          %s372 = smul.addr %s371, 64
          %s373 = scalar_lea.hbm %s0, %s372
          %s375 = sshll.u32 %s367, 4
          %s376 = int_to_ptr.vmem [resolvable:$true] %s375
          %378 = dma.hbm_to_vmem [thread:$0]  %s373, 128, %s376, %s364
        $region52: #{tpu_custom_call.1} parent=47 // pred_fallthru
          _
      $region48: #{tpu_custom_call.1} parent=5 // pred_fallthru
        _
      %p379 = scmp.le.s32.totalorder 1, %s25
      %p380 = scmp.lt.s32.totalorder %s25, 3
      %p381 = pnand %p379, %p380
      %p382 = pneg %p381
      // Predicated region
      $region53: #{tpu_custom_call.1} parent=5 // pred_check
        _
      $region54: #{tpu_custom_call.1} parent=5 // pred_check_branch
        %384 = sbr.rel (%p381) target = $region56
      $region55: #{tpu_custom_call.1} parent=5 // pred_region
        %s385 = ssub.s32 %s25, 1
        %s386 = sand.u32 %s38, 1
        %s387 = scalar_lea.sflag [#allocation3], %s386
        %s388 = sand.u32 %s38, 1
        %s389 = smul.addr %s388, 8
        %s390 = scalar_lea.vmem [#allocation2], %s389
        // Predicated region
        $region57: #{tpu_custom_call.1} parent=55 // pred_check
          %p391 = pneg %p51
        $region58: #{tpu_custom_call.1} parent=55 // pred_check_branch
          %393 = sbr.rel (%p391) target = $region60
        $region59: #{tpu_custom_call.1} parent=55 // pred_region
          %394 = dma.done %s387, 128
        $region60: #{tpu_custom_call.1} parent=55 // pred_fallthru
          _
        // Predicated region
        $region61: #{tpu_custom_call.1} parent=55 // pred_check
          %p395 = pneg %p72
        $region62: #{tpu_custom_call.1} parent=55 // pred_check_branch
          %397 = sbr.rel (%p395) target = $region64
        $region63: #{tpu_custom_call.1} parent=55 // pred_region
          %398 = dma.done [#allocation6], 1024
        $region64: #{tpu_custom_call.1} parent=55 // pred_fallthru
          _
        // Predicated region
        $region65: #{tpu_custom_call.1} parent=55 // pred_check
          %p399 = pneg %p93
        $region66: #{tpu_custom_call.1} parent=55 // pred_check_branch
          %401 = sbr.rel (%p399) target = $region68
        $region67: #{tpu_custom_call.1} parent=55 // pred_region
          %402 = dma.done [#allocation6], 1024
        $region68: #{tpu_custom_call.1} parent=55 // pred_fallthru
          _
        // Predicated region
        $region69: #{tpu_custom_call.1} parent=55 // pred_check
          %p403 = pneg %p114
        $region70: #{tpu_custom_call.1} parent=55 // pred_check_branch
          %405 = sbr.rel (%p403) target = $region72
        $region71: #{tpu_custom_call.1} parent=55 // pred_region
          %406 = dma.done [#allocation9], 1024
        $region72: #{tpu_custom_call.1} parent=55 // pred_fallthru
          _
        // Predicated region
        $region73: #{tpu_custom_call.1} parent=55 // pred_check
          %p407 = pneg %p135
        $region74: #{tpu_custom_call.1} parent=55 // pred_check_branch
          %409 = sbr.rel (%p407) target = $region76
        $region75: #{tpu_custom_call.1} parent=55 // pred_region
          %410 = dma.done [#allocation9], 32
        $region76: #{tpu_custom_call.1} parent=55 // pred_fallthru
          _
        // Predicated region
        $region77: #{tpu_custom_call.1} parent=55 // pred_check
          %p411 = pneg %p156
        $region78: #{tpu_custom_call.1} parent=55 // pred_check_branch
          %413 = sbr.rel (%p411) target = $region80
        $region79: #{tpu_custom_call.1} parent=55 // pred_region
          %414 = dma.done [#allocation12], 64
        $region80: #{tpu_custom_call.1} parent=55 // pred_fallthru
          _
        // Predicated region
        $region81: #{tpu_custom_call.1} parent=55 // pred_check
          %p415 = pneg %p177
        $region82: #{tpu_custom_call.1} parent=55 // pred_check_branch
          %417 = sbr.rel (%p415) target = $region84
        $region83: #{tpu_custom_call.1} parent=55 // pred_region
          %418 = dma.done [#allocation12], 64
        $region84: #{tpu_custom_call.1} parent=55 // pred_fallthru
          _
        // Predicated region
        $region85: #{tpu_custom_call.1} parent=55 // pred_check
          %p419 = pneg %p198
        $region86: #{tpu_custom_call.1} parent=55 // pred_check_branch
          %421 = sbr.rel (%p419) target = $region88
        $region87: #{tpu_custom_call.1} parent=55 // pred_region
          %422 = dma.done [#allocation15], 64
        $region88: #{tpu_custom_call.1} parent=55 // pred_fallthru
          _
        // Predicated region
        $region89: #{tpu_custom_call.1} parent=55 // pred_check
          %p423 = pneg %p219
        $region90: #{tpu_custom_call.1} parent=55 // pred_check_branch
          %425 = sbr.rel (%p423) target = $region92
        $region91: #{tpu_custom_call.1} parent=55 // pred_region
          %426 = dma.done [#allocation15], 2048
        $region92: #{tpu_custom_call.1} parent=55 // pred_fallthru
          _
        %s427 = sand.u32 %s38, 1
        %s428 = scalar_lea.sflag [#allocation3], %s427
        %s429 = sand.u32 %s38, 1
        %s430 = smul.addr %s429, 8
        %s431 = scalar_lea.vmem [#allocation2], %s430
        %p432 = pneg %p51
        %p433 = pneg %p48
        %p434 = pneg %p72
        %p435 = pneg %p69
        %p436 = pneg %p93
        %p437 = pneg %p90
        %p438 = pneg %p114
        %p439 = pneg %p111
        %p440 = pneg %p135
        %p441 = pneg %p132
        %p442 = pneg %p156
        %p443 = pneg %p153
        %p444 = pneg %p177
        %p445 = pneg %p174
        %p446 = pneg %p198
        %p447 = pneg %p195
        %p448 = pneg %p219
        %p449 = pneg %p216
        %p450 = pneg %p245
        %p451 = pneg %p242
        %s452 = sand.u32 %s232, 1
        %s453 = scalar_lea.sflag [#allocation4], %s452
        %s454 = sand.u32 %s232, 1
        %s455 = smul.addr %s454, 8
        %s456 = scalar_lea.vmem [#allocation17], %s455
        %v458 = vld [vmem:[%s390] sm:$0xff]
        %v460 = vcombine.high %v458, %v458
        %v462 = vpack.c.bf16 %v458, %v458
        %v463 = vpack.c.bf16 %v460, %v460
        %v464 = vld [vmem:[#allocation5] sm:$0xf]
        %v465 = vld [vmem:[#allocation5 + $0x4] sm:$0xf]
        %v466 = vld [vmem:[#allocation5 + $0x8] sm:$0xf]
        %v467 = vld [vmem:[#allocation5 + $0xc] sm:$0xf]
        %v468 = vld [vmem:[#allocation5 + $0x10] sm:$0xf]
        %v469 = vld [vmem:[#allocation5 + $0x14] sm:$0xf]
        %v470 = vld [vmem:[#allocation5 + $0x18] sm:$0xf]
        %v471 = vld [vmem:[#allocation5 + $0x1c] sm:$0xf]
        %v472 = vld [vmem:[#allocation5 + $0x20] sm:$0xf]
        %v473 = vld [vmem:[#allocation5 + $0x24] sm:$0xf]
        %v474 = vld [vmem:[#allocation5 + $0x28] sm:$0xf]
        %v475 = vld [vmem:[#allocation5 + $0x2c] sm:$0xf]
        %v476 = vld [vmem:[#allocation5 + $0x30] sm:$0xf]
        %v477 = vld [vmem:[#allocation5 + $0x34] sm:$0xf]
        %v478 = vld [vmem:[#allocation5 + $0x38] sm:$0xf]
        %v479 = vld [vmem:[#allocation5 + $0x3c] sm:$0xf]
        %v496 = vunpack.c.l.b16 %v464
        %v497 = vunpack.c.l.b16 %v465
        %v498 = vunpack.c.l.b16 %v466
        %v499 = vunpack.c.l.b16 %v467
        %v500 = vunpack.c.l.b16 %v468
        %v501 = vunpack.c.l.b16 %v469
        %v502 = vunpack.c.l.b16 %v470
        %v503 = vunpack.c.l.b16 %v471
        %v504 = vunpack.c.l.b16 %v472
        %v505 = vunpack.c.l.b16 %v473
        %v506 = vunpack.c.l.b16 %v474
        %v507 = vunpack.c.l.b16 %v475
        %v508 = vunpack.c.l.b16 %v476
        %v509 = vunpack.c.l.b16 %v477
        %v510 = vunpack.c.l.b16 %v478
        %v511 = vunpack.c.l.b16 %v479
        %v512 = vpack.c.b16 %v497, %v496
        %v513 = vpack.c.b16 %v499, %v498
        %v514 = vpack.c.b16 %v501, %v500
        %v515 = vpack.c.b16 %v503, %v502
        %v516 = vpack.c.b16 %v505, %v504
        %v517 = vpack.c.b16 %v507, %v506
        %v518 = vpack.c.b16 %v509, %v508
        %v519 = vpack.c.b16 %v511, %v510
        %vm520 = vcmask 31744
        %v522 = vsel %vm520, %v512, 0
        %v525 = vsel %vm520, %v513, 0
        %v528 = vsel %vm520, %v514, 0
        %v531 = vsel %vm520, %v515, 0
        %v534 = vsel %vm520, %v516, 0
        %v537 = vsel %vm520, %v517, 0
        %v540 = vsel %vm520, %v518, 0
        %v543 = vsel %vm520, %v519, 0
        %vm545 = vcmask 1041408
        %v547 = vsel %vm545, %v462, 0
        %v550 = vsel %vm545, %v463, 0
        %552 = vmatprep.subr.bf16.mxu0 %v550
        %553 = vmatpush1.bf16.msra.mxu0 %v547
        %554 = vmatprep.subr.bf16.mxu0 0
        %555 = vmatpush1.bf16.msra.mxu0 0
        %556 = vmatprep.subr.bf16.mxu0 0
        %557 = vmatpush1.bf16.msra.mxu0 0
        %558 = vmatprep.subr.bf16.mxu0 0
        %559 = vmatpush1.bf16.msra.mxu0 0
        %560 = vmatprep.subr.bf16.mxu0 0
        %561 = vmatpush1.bf16.msra.mxu0 0
        %562 = vmatprep.subr.bf16.mxu0 0
        %563 = vmatpush1.bf16.msra.mxu0 0
        %564 = vmatprep.subr.bf16.mxu0 0
        %565 = vmatpush1.bf16.msra.mxu0 0
        %566 = vmatprep.subr.bf16.mxu0 0
        %567 = vmatpush1.bf16.msra.mxu0 0
        %568 = vmatprep.subr.bf16.mxu0 0
        %569 = vmatpush1.bf16.msra.mxu0 0
        %570 = vmatprep.subr.bf16.mxu0 0
        %571 = vmatpush1.bf16.msra.mxu0 0
        %572 = vmatprep.subr.bf16.mxu0 0
        %573 = vmatpush1.bf16.msra.mxu0 0
        %574 = vmatprep.subr.bf16.mxu0 0
        %575 = vmatpush1.bf16.msra.mxu0 0
        %576 = vmatprep.subr.bf16.mxu0 0
        %577 = vmatpush1.bf16.msra.mxu0 0
        %578 = vmatprep.subr.bf16.mxu0 0
        %579 = vmatpush1.bf16.msra.mxu0 0
        %580 = vmatprep.subr.bf16.mxu0 0
        %581 = vmatpush1.bf16.msra.mxu0 0
        %582 = vmatprep.subr.bf16.mxu0 0
        %583 = vmatpush1.bf16.msra.mxu0 0
        %584 = vmatprep.mubr.bf16.mxu0 0
        %585 = vmatmul.mubr.bf16.gmra.mrb[0].mxu0 %v522
        %v586 = vpop.f32.mrb[0].mxu0
        %v587 = vadd.f32 0.0, %v586
        %v588 = vpop.f32.mrb[0].mxu0
        %v589 = vadd.f32 0.0, %v588
        %v590 = vpop.f32.mrb[0].mxu0
        %v591 = vadd.f32 0.0, %v590
        %v592 = vpop.f32.mrb[0].mxu0
        %v593 = vadd.f32 0.0, %v592
        %594 = vmatprep.mubr.bf16.mxu0 0
        %595 = vmatmul.mubr.bf16.gmra.mrb[0].mxu0 %v525
        %v596 = vpop.f32.mrb[0].mxu0
        %v597 = vadd.f32 0.0, %v596
        %v598 = vpop.f32.mrb[0].mxu0
        %v599 = vadd.f32 0.0, %v598
        %v600 = vpop.f32.mrb[0].mxu0
        %v601 = vadd.f32 0.0, %v600
        %v602 = vpop.f32.mrb[0].mxu0
        %v603 = vadd.f32 0.0, %v602
        %604 = vmatprep.mubr.bf16.mxu0 0
        %605 = vmatmul.mubr.bf16.gmra.mrb[0].mxu0 %v528
        %v606 = vpop.f32.mrb[0].mxu0
        %v607 = vadd.f32 0.0, %v606
        %v608 = vpop.f32.mrb[0].mxu0
        %v609 = vadd.f32 0.0, %v608
        %v610 = vpop.f32.mrb[0].mxu0
        %v611 = vadd.f32 0.0, %v610
        %v612 = vpop.f32.mrb[0].mxu0
        %v613 = vadd.f32 0.0, %v612
        %614 = vmatprep.mubr.bf16.mxu0 0
        %615 = vmatmul.mubr.bf16.gmra.mrb[0].mxu0 %v531
        %v616 = vpop.f32.mrb[0].mxu0
        %v617 = vadd.f32 0.0, %v616
        %v618 = vpop.f32.mrb[0].mxu0
        %v619 = vadd.f32 0.0, %v618
        %v620 = vpop.f32.mrb[0].mxu0
        %v621 = vadd.f32 0.0, %v620
        %v622 = vpop.f32.mrb[0].mxu0
        %v623 = vadd.f32 0.0, %v622
        %624 = vmatprep.mubr.bf16.mxu0 0
        %625 = vmatmul.mubr.bf16.gmra.mrb[0].mxu0 %v534
        %v626 = vpop.f32.mrb[0].mxu0
        %v627 = vadd.f32 0.0, %v626
        %v628 = vpop.f32.mrb[0].mxu0
        %v629 = vadd.f32 0.0, %v628
        %v630 = vpop.f32.mrb[0].mxu0
        %v631 = vadd.f32 0.0, %v630
        %v632 = vpop.f32.mrb[0].mxu0
        %v633 = vadd.f32 0.0, %v632
        %634 = vmatprep.mubr.bf16.mxu0 0
        %635 = vmatmul.mubr.bf16.gmra.mrb[0].mxu0 %v537
        %v636 = vpop.f32.mrb[0].mxu0
        %v637 = vadd.f32 0.0, %v636
        %v638 = vpop.f32.mrb[0].mxu0
        %v639 = vadd.f32 0.0, %v638
        %v640 = vpop.f32.mrb[0].mxu0
        %v641 = vadd.f32 0.0, %v640
        %v642 = vpop.f32.mrb[0].mxu0
        %v643 = vadd.f32 0.0, %v642
        %644 = vmatprep.mubr.bf16.mxu0 0
        %645 = vmatmul.mubr.bf16.gmra.mrb[0].mxu0 %v540
        %v646 = vpop.f32.mrb[0].mxu0
        %v647 = vadd.f32 0.0, %v646
        %v648 = vpop.f32.mrb[0].mxu0
        %v649 = vadd.f32 0.0, %v648
        %v650 = vpop.f32.mrb[0].mxu0
        %v651 = vadd.f32 0.0, %v650
        %v652 = vpop.f32.mrb[0].mxu0
        %v653 = vadd.f32 0.0, %v652
        %654 = vmatprep.mubr.bf16.mxu0 0
        %655 = vmatmul.mubr.bf16.gmra.mrb[0].mxu0 %v543
        %v656 = vpop.f32.mrb[0].mxu0
        %v657 = vadd.f32 0.0, %v656
        %v658 = vpop.f32.mrb[0].mxu0
        %v659 = vadd.f32 0.0, %v658
        %v660 = vpop.f32.mrb[0].mxu0
        %v661 = vadd.f32 0.0, %v660
        %v662 = vpop.f32.mrb[0].mxu0
        %v663 = vadd.f32 0.0, %v662
        %664 = vdwg.mxu0
        %v665 = vld [vmem:[#allocation7] sm:$0xf]
        %v666 = vld [vmem:[#allocation7 + $0x4] sm:$0xf]
        %v667 = vld [vmem:[#allocation7 + $0x8] sm:$0xf]
        %v668 = vld [vmem:[#allocation7 + $0xc] sm:$0xf]
        %v669 = vld [vmem:[#allocation7 + $0x10] sm:$0xf]
        %v670 = vld [vmem:[#allocation7 + $0x14] sm:$0xf]
        %v671 = vld [vmem:[#allocation7 + $0x18] sm:$0xf]
        %v672 = vld [vmem:[#allocation7 + $0x1c] sm:$0xf]
        %v673 = vld [vmem:[#allocation7 + $0x20] sm:$0xf]
        %v674 = vld [vmem:[#allocation7 + $0x24] sm:$0xf]
        %v675 = vld [vmem:[#allocation7 + $0x28] sm:$0xf]
        %v676 = vld [vmem:[#allocation7 + $0x2c] sm:$0xf]
        %v677 = vld [vmem:[#allocation7 + $0x30] sm:$0xf]
        %v678 = vld [vmem:[#allocation7 + $0x34] sm:$0xf]
        %v679 = vld [vmem:[#allocation7 + $0x38] sm:$0xf]
        %v680 = vld [vmem:[#allocation7 + $0x3c] sm:$0xf]
        %v697 = vunpack.c.l.b16 %v665
        %v698 = vunpack.c.l.b16 %v666
        %v699 = vunpack.c.l.b16 %v667
        %v700 = vunpack.c.l.b16 %v668
        %v701 = vunpack.c.l.b16 %v669
        %v702 = vunpack.c.l.b16 %v670
        %v703 = vunpack.c.l.b16 %v671
        %v704 = vunpack.c.l.b16 %v672
        %v705 = vunpack.c.l.b16 %v673
        %v706 = vunpack.c.l.b16 %v674
        %v707 = vunpack.c.l.b16 %v675
        %v708 = vunpack.c.l.b16 %v676
        %v709 = vunpack.c.l.b16 %v677
        %v710 = vunpack.c.l.b16 %v678
        %v711 = vunpack.c.l.b16 %v679
        %v712 = vunpack.c.l.b16 %v680
        %v713 = vpack.c.b16 %v698, %v697
        %v714 = vpack.c.b16 %v700, %v699
        %v715 = vpack.c.b16 %v702, %v701
        %v716 = vpack.c.b16 %v704, %v703
        %v717 = vpack.c.b16 %v706, %v705
        %v718 = vpack.c.b16 %v708, %v707
        %v719 = vpack.c.b16 %v710, %v709
        %v720 = vpack.c.b16 %v712, %v711
        %v722 = vsel %vm520, %v713, 0
        %v725 = vsel %vm520, %v714, 0
        %v728 = vsel %vm520, %v715, 0
        %v731 = vsel %vm520, %v716, 0
        %v734 = vsel %vm520, %v717, 0
        %v737 = vsel %vm520, %v718, 0
        %v740 = vsel %vm520, %v719, 0
        %v743 = vsel %vm520, %v720, 0
        %745 = vmatprep.subr.bf16.mxu0 %v550
        %746 = vmatpush1.bf16.msra.mxu0 %v547
        %747 = vmatprep.subr.bf16.mxu0 0
        %748 = vmatpush1.bf16.msra.mxu0 0
        %749 = vmatprep.subr.bf16.mxu0 0
        %750 = vmatpush1.bf16.msra.mxu0 0
        %751 = vmatprep.subr.bf16.mxu0 0
        %752 = vmatpush1.bf16.msra.mxu0 0
        %753 = vmatprep.subr.bf16.mxu0 0
        %754 = vmatpush1.bf16.msra.mxu0 0
        %755 = vmatprep.subr.bf16.mxu0 0
        %756 = vmatpush1.bf16.msra.mxu0 0
        %757 = vmatprep.subr.bf16.mxu0 0
        %758 = vmatpush1.bf16.msra.mxu0 0
        %759 = vmatprep.subr.bf16.mxu0 0
        %760 = vmatpush1.bf16.msra.mxu0 0
        %761 = vmatprep.subr.bf16.mxu0 0
        %762 = vmatpush1.bf16.msra.mxu0 0
        %763 = vmatprep.subr.bf16.mxu0 0
        %764 = vmatpush1.bf16.msra.mxu0 0
        %765 = vmatprep.subr.bf16.mxu0 0
        %766 = vmatpush1.bf16.msra.mxu0 0
        %767 = vmatprep.subr.bf16.mxu0 0
        %768 = vmatpush1.bf16.msra.mxu0 0
        %769 = vmatprep.subr.bf16.mxu0 0
        %770 = vmatpush1.bf16.msra.mxu0 0
        %771 = vmatprep.subr.bf16.mxu0 0
        %772 = vmatpush1.bf16.msra.mxu0 0
        %773 = vmatprep.subr.bf16.mxu0 0
        %774 = vmatpush1.bf16.msra.mxu0 0
        %775 = vmatprep.subr.bf16.mxu0 0
        %776 = vmatpush1.bf16.msra.mxu0 0
        %777 = vmatprep.mubr.bf16.mxu0 0
        %778 = vmatmul.mubr.bf16.gmra.mrb[0].mxu0 %v722
        %v779 = vpop.f32.mrb[0].mxu0
        %v780 = vadd.f32 0.0, %v779
        %v781 = vpop.f32.mrb[0].mxu0
        %v782 = vadd.f32 0.0, %v781
        %v783 = vpop.f32.mrb[0].mxu0
        %v784 = vadd.f32 0.0, %v783
        %v785 = vpop.f32.mrb[0].mxu0
        %v786 = vadd.f32 0.0, %v785
        %787 = vmatprep.mubr.bf16.mxu0 0
        %788 = vmatmul.mubr.bf16.gmra.mrb[0].mxu0 %v725
        %v789 = vpop.f32.mrb[0].mxu0
        %v790 = vadd.f32 0.0, %v789
        %v791 = vpop.f32.mrb[0].mxu0
        %v792 = vadd.f32 0.0, %v791
        %v793 = vpop.f32.mrb[0].mxu0
        %v794 = vadd.f32 0.0, %v793
        %v795 = vpop.f32.mrb[0].mxu0
        %v796 = vadd.f32 0.0, %v795
        %797 = vmatprep.mubr.bf16.mxu0 0
        %798 = vmatmul.mubr.bf16.gmra.mrb[0].mxu0 %v728
        %v799 = vpop.f32.mrb[0].mxu0
        %v800 = vadd.f32 0.0, %v799
        %v801 = vpop.f32.mrb[0].mxu0
        %v802 = vadd.f32 0.0, %v801
        %v803 = vpop.f32.mrb[0].mxu0
        %v804 = vadd.f32 0.0, %v803
        %v805 = vpop.f32.mrb[0].mxu0
        %v806 = vadd.f32 0.0, %v805
        %807 = vmatprep.mubr.bf16.mxu0 0
        %808 = vmatmul.mubr.bf16.gmra.mrb[0].mxu0 %v731
        %v809 = vpop.f32.mrb[0].mxu0
        %v810 = vadd.f32 0.0, %v809
        %v811 = vpop.f32.mrb[0].mxu0
        %v812 = vadd.f32 0.0, %v811
        %v813 = vpop.f32.mrb[0].mxu0
        %v814 = vadd.f32 0.0, %v813
        %v815 = vpop.f32.mrb[0].mxu0
        %v816 = vadd.f32 0.0, %v815
        %817 = vmatprep.mubr.bf16.mxu0 0
        %818 = vmatmul.mubr.bf16.gmra.mrb[0].mxu0 %v734
        %v819 = vpop.f32.mrb[0].mxu0
        %v820 = vadd.f32 0.0, %v819
        %v821 = vpop.f32.mrb[0].mxu0
        %v822 = vadd.f32 0.0, %v821
        %v823 = vpop.f32.mrb[0].mxu0
        %v824 = vadd.f32 0.0, %v823
        %v825 = vpop.f32.mrb[0].mxu0
        %v826 = vadd.f32 0.0, %v825
        %827 = vmatprep.mubr.bf16.mxu0 0
        %828 = vmatmul.mubr.bf16.gmra.mrb[0].mxu0 %v737
        %v829 = vpop.f32.mrb[0].mxu0
        %v830 = vadd.f32 0.0, %v829
        %v831 = vpop.f32.mrb[0].mxu0
        %v832 = vadd.f32 0.0, %v831
        %v833 = vpop.f32.mrb[0].mxu0
        %v834 = vadd.f32 0.0, %v833
        %v835 = vpop.f32.mrb[0].mxu0
        %v836 = vadd.f32 0.0, %v835
        %837 = vmatprep.mubr.bf16.mxu0 0
        %838 = vmatmul.mubr.bf16.gmra.mrb[0].mxu0 %v740
        %v839 = vpop.f32.mrb[0].mxu0
        %v840 = vadd.f32 0.0, %v839
        %v841 = vpop.f32.mrb[0].mxu0
        %v842 = vadd.f32 0.0, %v841
        %v843 = vpop.f32.mrb[0].mxu0
        %v844 = vadd.f32 0.0, %v843
        %v845 = vpop.f32.mrb[0].mxu0
        %v846 = vadd.f32 0.0, %v845
        %847 = vmatprep.mubr.bf16.mxu0 0
        %848 = vmatmul.mubr.bf16.gmra.mrb[0].mxu0 %v743
        %v849 = vpop.f32.mrb[0].mxu0
        %v850 = vadd.f32 0.0, %v849
        %v851 = vpop.f32.mrb[0].mxu0
        %v852 = vadd.f32 0.0, %v851
        %v853 = vpop.f32.mrb[0].mxu0
        %v854 = vadd.f32 0.0, %v853
        %v855 = vpop.f32.mrb[0].mxu0
        %v856 = vadd.f32 0.0, %v855
        %857 = vdwg.mxu0
        %v858 = vld [vmem:[#allocation8] sm:$0xf]
        %v859 = vld [vmem:[#allocation8 + $0x4] sm:$0xf]
        %v860 = vld [vmem:[#allocation8 + $0x8] sm:$0xf]
        %v861 = vld [vmem:[#allocation8 + $0xc] sm:$0xf]
        %v862 = vld [vmem:[#allocation8 + $0x10] sm:$0xf]
        %v863 = vld [vmem:[#allocation8 + $0x14] sm:$0xf]
        %v864 = vld [vmem:[#allocation8 + $0x18] sm:$0xf]
        %v865 = vld [vmem:[#allocation8 + $0x1c] sm:$0xf]
        %v866 = vld [vmem:[#allocation8 + $0x20] sm:$0xf]
        %v867 = vld [vmem:[#allocation8 + $0x24] sm:$0xf]
        %v868 = vld [vmem:[#allocation8 + $0x28] sm:$0xf]
        %v869 = vld [vmem:[#allocation8 + $0x2c] sm:$0xf]
        %v870 = vld [vmem:[#allocation8 + $0x30] sm:$0xf]
        %v871 = vld [vmem:[#allocation8 + $0x34] sm:$0xf]
        %v872 = vld [vmem:[#allocation8 + $0x38] sm:$0xf]
        %v873 = vld [vmem:[#allocation8 + $0x3c] sm:$0xf]
        %v890 = vunpack.c.l.b16 %v858
        %v891 = vunpack.c.l.b16 %v859
        %v892 = vunpack.c.l.b16 %v860
        %v893 = vunpack.c.l.b16 %v861
        %v894 = vunpack.c.l.b16 %v862
        %v895 = vunpack.c.l.b16 %v863
        %v896 = vunpack.c.l.b16 %v864
        %v897 = vunpack.c.l.b16 %v865
        %v898 = vunpack.c.l.b16 %v866
        %v899 = vunpack.c.l.b16 %v867
        %v900 = vunpack.c.l.b16 %v868
        %v901 = vunpack.c.l.b16 %v869
        %v902 = vunpack.c.l.b16 %v870
        %v903 = vunpack.c.l.b16 %v871
        %v904 = vunpack.c.l.b16 %v872
        %v905 = vunpack.c.l.b16 %v873
        %v906 = vpack.c.b16 %v891, %v890
        %v907 = vpack.c.b16 %v893, %v892
        %v908 = vpack.c.b16 %v895, %v894
        %v909 = vpack.c.b16 %v897, %v896
        %v910 = vpack.c.b16 %v899, %v898
        %v911 = vpack.c.b16 %v901, %v900
        %v912 = vpack.c.b16 %v903, %v902
        %v913 = vpack.c.b16 %v905, %v904
        %v915 = vsel %vm520, %v906, 0
        %v918 = vsel %vm520, %v907, 0
        %v921 = vsel %vm520, %v908, 0
        %v924 = vsel %vm520, %v909, 0
        %v927 = vsel %vm520, %v910, 0
        %v930 = vsel %vm520, %v911, 0
        %v933 = vsel %vm520, %v912, 0
        %v936 = vsel %vm520, %v913, 0
        %938 = vmatprep.subr.bf16.mxu0 %v550
        %939 = vmatpush1.bf16.msra.mxu0 %v547
        %940 = vmatprep.subr.bf16.mxu0 0
        %941 = vmatpush1.bf16.msra.mxu0 0
        %942 = vmatprep.subr.bf16.mxu0 0
        %943 = vmatpush1.bf16.msra.mxu0 0
        %944 = vmatprep.subr.bf16.mxu0 0
        %945 = vmatpush1.bf16.msra.mxu0 0
        %946 = vmatprep.subr.bf16.mxu0 0
        %947 = vmatpush1.bf16.msra.mxu0 0
        %948 = vmatprep.subr.bf16.mxu0 0
        %949 = vmatpush1.bf16.msra.mxu0 0
        %950 = vmatprep.subr.bf16.mxu0 0
        %951 = vmatpush1.bf16.msra.mxu0 0
        %952 = vmatprep.subr.bf16.mxu0 0
        %953 = vmatpush1.bf16.msra.mxu0 0
        %954 = vmatprep.subr.bf16.mxu0 0
        %955 = vmatpush1.bf16.msra.mxu0 0
        %956 = vmatprep.subr.bf16.mxu0 0
        %957 = vmatpush1.bf16.msra.mxu0 0
        %958 = vmatprep.subr.bf16.mxu0 0
        %959 = vmatpush1.bf16.msra.mxu0 0
        %960 = vmatprep.subr.bf16.mxu0 0
        %961 = vmatpush1.bf16.msra.mxu0 0
        %962 = vmatprep.subr.bf16.mxu0 0
        %963 = vmatpush1.bf16.msra.mxu0 0
        %964 = vmatprep.subr.bf16.mxu0 0
        %965 = vmatpush1.bf16.msra.mxu0 0
        %966 = vmatprep.subr.bf16.mxu0 0
        %967 = vmatpush1.bf16.msra.mxu0 0
        %968 = vmatprep.subr.bf16.mxu0 0
        %969 = vmatpush1.bf16.msra.mxu0 0
        %970 = vmatprep.mubr.bf16.mxu0 0
        %971 = vmatmul.mubr.bf16.gmra.mrb[0].mxu0 %v915
        %v972 = vpop.f32.mrb[0].mxu0
        %v973 = vadd.f32 0.0, %v972
        %v974 = vpop.f32.mrb[0].mxu0
        %v975 = vadd.f32 0.0, %v974
        %v976 = vpop.f32.mrb[0].mxu0
        %v977 = vadd.f32 0.0, %v976
        %v978 = vpop.f32.mrb[0].mxu0
        %v979 = vadd.f32 0.0, %v978
        %980 = vmatprep.mubr.bf16.mxu0 0
        %981 = vmatmul.mubr.bf16.gmra.mrb[0].mxu0 %v918
        %v982 = vpop.f32.mrb[0].mxu0
        %v983 = vadd.f32 0.0, %v982
        %v984 = vpop.f32.mrb[0].mxu0
        %v985 = vadd.f32 0.0, %v984
        %v986 = vpop.f32.mrb[0].mxu0
        %v987 = vadd.f32 0.0, %v986
        %v988 = vpop.f32.mrb[0].mxu0
        %v989 = vadd.f32 0.0, %v988
        %990 = vmatprep.mubr.bf16.mxu0 0
        %991 = vmatmul.mubr.bf16.gmra.mrb[0].mxu0 %v921
        %v992 = vpop.f32.mrb[0].mxu0
        %v993 = vadd.f32 0.0, %v992
        %v994 = vpop.f32.mrb[0].mxu0
        %v995 = vadd.f32 0.0, %v994
        %v996 = vpop.f32.mrb[0].mxu0
        %v997 = vadd.f32 0.0, %v996
        %v998 = vpop.f32.mrb[0].mxu0
        %v999 = vadd.f32 0.0, %v998
        %1000 = vmatprep.mubr.bf16.mxu0 0
        %1001 = vmatmul.mubr.bf16.gmra.mrb[0].mxu0 %v924
        %v1002 = vpop.f32.mrb[0].mxu0
        %v1003 = vadd.f32 0.0, %v1002
        %v1004 = vpop.f32.mrb[0].mxu0
        %v1005 = vadd.f32 0.0, %v1004
        %v1006 = vpop.f32.mrb[0].mxu0
        %v1007 = vadd.f32 0.0, %v1006
        %v1008 = vpop.f32.mrb[0].mxu0
        %v1009 = vadd.f32 0.0, %v1008
        %1010 = vmatprep.mubr.bf16.mxu0 0
        %1011 = vmatmul.mubr.bf16.gmra.mrb[0].mxu0 %v927
        %v1012 = vpop.f32.mrb[0].mxu0
        %v1013 = vadd.f32 0.0, %v1012
        %v1014 = vpop.f32.mrb[0].mxu0
        %v1015 = vadd.f32 0.0, %v1014
        %v1016 = vpop.f32.mrb[0].mxu0
        %v1017 = vadd.f32 0.0, %v1016
        %v1018 = vpop.f32.mrb[0].mxu0
        %v1019 = vadd.f32 0.0, %v1018
        %1020 = vmatprep.mubr.bf16.mxu0 0
        %1021 = vmatmul.mubr.bf16.gmra.mrb[0].mxu0 %v930
        %v1022 = vpop.f32.mrb[0].mxu0
        %v1023 = vadd.f32 0.0, %v1022
        %v1024 = vpop.f32.mrb[0].mxu0
        %v1025 = vadd.f32 0.0, %v1024
        %v1026 = vpop.f32.mrb[0].mxu0
        %v1027 = vadd.f32 0.0, %v1026
        %v1028 = vpop.f32.mrb[0].mxu0
        %v1029 = vadd.f32 0.0, %v1028
        %1030 = vmatprep.mubr.bf16.mxu0 0
        %1031 = vmatmul.mubr.bf16.gmra.mrb[0].mxu0 %v933
        %v1032 = vpop.f32.mrb[0].mxu0
        %v1033 = vadd.f32 0.0, %v1032
        %v1034 = vpop.f32.mrb[0].mxu0
        %v1035 = vadd.f32 0.0, %v1034
        %v1036 = vpop.f32.mrb[0].mxu0
        %v1037 = vadd.f32 0.0, %v1036
        %v1038 = vpop.f32.mrb[0].mxu0
        %v1039 = vadd.f32 0.0, %v1038
        %1040 = vmatprep.mubr.bf16.mxu0 0
        %1041 = vmatmul.mubr.bf16.gmra.mrb[0].mxu0 %v936
        %v1042 = vpop.f32.mrb[0].mxu0
        %v1043 = vadd.f32 0.0, %v1042
        %v1044 = vpop.f32.mrb[0].mxu0
        %v1045 = vadd.f32 0.0, %v1044
        %v1046 = vpop.f32.mrb[0].mxu0
        %v1047 = vadd.f32 0.0, %v1046
        %v1048 = vpop.f32.mrb[0].mxu0
        %v1049 = vadd.f32 0.0, %v1048
        %1050 = vdwg.mxu0
        %v1051 = vmax.f32 %v780, %v782
        %1052 = vmax.xlane.f32.xlu0 %v1051
        %v1053 = vpop.xlane.xlu0 %1052
        %v1054 = vmax.f32 %v784, %v786
        %1055 = vmax.xlane.f32.xlu0 %v1054
        %v1056 = vpop.xlane.xlu0 %1055
        %v1057 = vmax.f32 %v790, %v792
        %1058 = vmax.xlane.f32.xlu0 %v1057
        %v1059 = vpop.xlane.xlu0 %1058
        %v1060 = vmax.f32 %v794, %v796
        %1061 = vmax.xlane.f32.xlu0 %v1060
        %v1062 = vpop.xlane.xlu0 %1061
        %v1063 = vmax.f32 %v800, %v802
        %1064 = vmax.xlane.f32.xlu0 %v1063
        %v1065 = vpop.xlane.xlu0 %1064
        %v1066 = vmax.f32 %v804, %v806
        %1067 = vmax.xlane.f32.xlu0 %v1066
        %v1068 = vpop.xlane.xlu0 %1067
        %v1069 = vmax.f32 %v810, %v812
        %1070 = vmax.xlane.f32.xlu0 %v1069
        %v1071 = vpop.xlane.xlu0 %1070
        %v1072 = vmax.f32 %v814, %v816
        %1073 = vmax.xlane.f32.xlu0 %v1072
        %v1074 = vpop.xlane.xlu0 %1073
        %v1075 = vmax.f32 %v820, %v822
        %1076 = vmax.xlane.f32.xlu0 %v1075
        %v1077 = vpop.xlane.xlu0 %1076
        %v1078 = vmax.f32 %v824, %v826
        %1079 = vmax.xlane.f32.xlu0 %v1078
        %v1080 = vpop.xlane.xlu0 %1079
        %v1081 = vmax.f32 %v830, %v832
        %1082 = vmax.xlane.f32.xlu0 %v1081
        %v1083 = vpop.xlane.xlu0 %1082
        %v1084 = vmax.f32 %v834, %v836
        %1085 = vmax.xlane.f32.xlu0 %v1084
        %v1086 = vpop.xlane.xlu0 %1085
        %v1087 = vmax.f32 %v840, %v842
        %1088 = vmax.xlane.f32.xlu0 %v1087
        %v1089 = vpop.xlane.xlu0 %1088
        %v1090 = vmax.f32 %v844, %v846
        %1091 = vmax.xlane.f32.xlu0 %v1090
        %v1092 = vpop.xlane.xlu0 %1091
        %v1093 = vmax.f32 %v850, %v852
        %1094 = vmax.xlane.f32.xlu0 %v1093
        %v1095 = vpop.xlane.xlu0 %1094
        %v1096 = vmax.f32 %v854, %v856
        %1097 = vmax.xlane.f32.xlu0 %v1096
        %v1098 = vpop.xlane.xlu0 %1097
        %v1099 = vsub.f32 %v780, %v1053
        %v1100 = vsub.f32 %v782, %v1053
        %v1101 = vsub.f32 %v784, %v1056
        %v1102 = vsub.f32 %v786, %v1056
        %v1103 = vsub.f32 %v790, %v1059
        %v1104 = vsub.f32 %v792, %v1059
        %v1105 = vsub.f32 %v794, %v1062
        %v1106 = vsub.f32 %v796, %v1062
        %v1107 = vsub.f32 %v800, %v1065
        %v1108 = vsub.f32 %v802, %v1065
        %v1109 = vsub.f32 %v804, %v1068
        %v1110 = vsub.f32 %v806, %v1068
        %v1111 = vsub.f32 %v810, %v1071
        %v1112 = vsub.f32 %v812, %v1071
        %v1113 = vsub.f32 %v814, %v1074
        %v1114 = vsub.f32 %v816, %v1074
        %v1115 = vsub.f32 %v820, %v1077
        %v1116 = vsub.f32 %v822, %v1077
        %v1117 = vsub.f32 %v824, %v1080
        %v1118 = vsub.f32 %v826, %v1080
        %v1119 = vsub.f32 %v830, %v1083
        %v1120 = vsub.f32 %v832, %v1083
        %v1121 = vsub.f32 %v834, %v1086
        %v1122 = vsub.f32 %v836, %v1086
        %v1123 = vsub.f32 %v840, %v1089
        %v1124 = vsub.f32 %v842, %v1089
        %v1125 = vsub.f32 %v844, %v1092
        %v1126 = vsub.f32 %v846, %v1092
        %v1127 = vsub.f32 %v850, %v1095
        %v1128 = vsub.f32 %v852, %v1095
        %v1129 = vsub.f32 %v854, %v1098
        %v1130 = vsub.f32 %v856, %v1098
        %v1131 = vpack.c.bf16 %v1101, %v1099
        %v1132 = vpack.c.bf16 %v1102, %v1100
        %v1133 = vpack.c.bf16 %v1105, %v1103
        %v1134 = vpack.c.bf16 %v1106, %v1104
        %v1135 = vpack.c.bf16 %v1109, %v1107
        %v1136 = vpack.c.bf16 %v1110, %v1108
        %v1137 = vpack.c.bf16 %v1113, %v1111
        %v1138 = vpack.c.bf16 %v1114, %v1112
        %v1139 = vpack.c.bf16 %v1117, %v1115
        %v1140 = vpack.c.bf16 %v1118, %v1116
        %v1141 = vpack.c.bf16 %v1121, %v1119
        %v1142 = vpack.c.bf16 %v1122, %v1120
        %v1143 = vpack.c.bf16 %v1125, %v1123
        %v1144 = vpack.c.bf16 %v1126, %v1124
        %v1145 = vpack.c.bf16 %v1129, %v1127
        %v1146 = vpack.c.bf16 %v1130, %v1128
        %v1148 = vmul.bf16 %v1131, 1069105081
        %v1149 = vpow.bf16.pop %v1148
        %v1151 = vmul.bf16 %v1132, 1069105081
        %v1152 = vpow.bf16.pop %v1151
        %v1154 = vmul.bf16 %v1133, 1069105081
        %v1155 = vpow.bf16.pop %v1154
        %v1157 = vmul.bf16 %v1134, 1069105081
        %v1158 = vpow.bf16.pop %v1157
        %v1160 = vmul.bf16 %v1135, 1069105081
        %v1161 = vpow.bf16.pop %v1160
        %v1163 = vmul.bf16 %v1136, 1069105081
        %v1164 = vpow.bf16.pop %v1163
        %v1166 = vmul.bf16 %v1137, 1069105081
        %v1167 = vpow.bf16.pop %v1166
        %v1169 = vmul.bf16 %v1138, 1069105081
        %v1170 = vpow.bf16.pop %v1169
        %v1172 = vmul.bf16 %v1139, 1069105081
        %v1173 = vpow.bf16.pop %v1172
        %v1175 = vmul.bf16 %v1140, 1069105081
        %v1176 = vpow.bf16.pop %v1175
        %v1178 = vmul.bf16 %v1141, 1069105081
        %v1179 = vpow.bf16.pop %v1178
        %v1181 = vmul.bf16 %v1142, 1069105081
        %v1182 = vpow.bf16.pop %v1181
        %v1184 = vmul.bf16 %v1143, 1069105081
        %v1185 = vpow.bf16.pop %v1184
        %v1187 = vmul.bf16 %v1144, 1069105081
        %v1188 = vpow.bf16.pop %v1187
        %v1190 = vmul.bf16 %v1145, 1069105081
        %v1191 = vpow.bf16.pop %v1190
        %v1193 = vmul.bf16 %v1146, 1069105081
        %v1194 = vpow.bf16.pop %v1193
        %v1195 = vunpack.c.l.bf16 %v1149
        %v1196 = vunpack.c.l.bf16 %v1152
        %v1197 = vunpack.c.h.bf16 %v1149
        %v1198 = vunpack.c.h.bf16 %v1152
        %v1199 = vunpack.c.l.bf16 %v1155
        %v1200 = vunpack.c.l.bf16 %v1158
        %v1201 = vunpack.c.h.bf16 %v1155
        %v1202 = vunpack.c.h.bf16 %v1158
        %v1203 = vunpack.c.l.bf16 %v1161
        %v1204 = vunpack.c.l.bf16 %v1164
        %v1205 = vunpack.c.h.bf16 %v1161
        %v1206 = vunpack.c.h.bf16 %v1164
        %v1207 = vunpack.c.l.bf16 %v1167
        %v1208 = vunpack.c.l.bf16 %v1170
        %v1209 = vunpack.c.h.bf16 %v1167
        %v1210 = vunpack.c.h.bf16 %v1170
        %v1211 = vunpack.c.l.bf16 %v1173
        %v1212 = vunpack.c.l.bf16 %v1176
        %v1213 = vunpack.c.h.bf16 %v1173
        %v1214 = vunpack.c.h.bf16 %v1176
        %v1215 = vunpack.c.l.bf16 %v1179
        %v1216 = vunpack.c.l.bf16 %v1182
        %v1217 = vunpack.c.h.bf16 %v1179
        %v1218 = vunpack.c.h.bf16 %v1182
        %v1219 = vunpack.c.l.bf16 %v1185
        %v1220 = vunpack.c.l.bf16 %v1188
        %v1221 = vunpack.c.h.bf16 %v1185
        %v1222 = vunpack.c.h.bf16 %v1188
        %v1223 = vunpack.c.l.bf16 %v1191
        %v1224 = vunpack.c.l.bf16 %v1194
        %v1225 = vunpack.c.h.bf16 %v1191
        %v1226 = vunpack.c.h.bf16 %v1194
        %v1227 = vadd.f32 %v1195, %v1196
        %1228 = vadd.xlane.f32.xlu0 %v1227
        %v1229 = vpop.xlane.xlu0 %1228
        %v1230 = vadd.f32 %v1197, %v1198
        %1231 = vadd.xlane.f32.xlu0 %v1230
        %v1232 = vpop.xlane.xlu0 %1231
        %v1233 = vadd.f32 %v1199, %v1200
        %1234 = vadd.xlane.f32.xlu0 %v1233
        %v1235 = vpop.xlane.xlu0 %1234
        %v1236 = vadd.f32 %v1201, %v1202
        %1237 = vadd.xlane.f32.xlu0 %v1236
        %v1238 = vpop.xlane.xlu0 %1237
        %v1239 = vadd.f32 %v1203, %v1204
        %1240 = vadd.xlane.f32.xlu0 %v1239
        %v1241 = vpop.xlane.xlu0 %1240
        %v1242 = vadd.f32 %v1205, %v1206
        %1243 = vadd.xlane.f32.xlu0 %v1242
        %v1244 = vpop.xlane.xlu0 %1243
        %v1245 = vadd.f32 %v1207, %v1208
        %1246 = vadd.xlane.f32.xlu0 %v1245
        %v1247 = vpop.xlane.xlu0 %1246
        %v1248 = vadd.f32 %v1209, %v1210
        %1249 = vadd.xlane.f32.xlu0 %v1248
        %v1250 = vpop.xlane.xlu0 %1249
        %v1251 = vadd.f32 %v1211, %v1212
        %1252 = vadd.xlane.f32.xlu0 %v1251
        %v1253 = vpop.xlane.xlu0 %1252
        %v1254 = vadd.f32 %v1213, %v1214
        %1255 = vadd.xlane.f32.xlu0 %v1254
        %v1256 = vpop.xlane.xlu0 %1255
        %v1257 = vadd.f32 %v1215, %v1216
        %1258 = vadd.xlane.f32.xlu0 %v1257
        %v1259 = vpop.xlane.xlu0 %1258
        %v1260 = vadd.f32 %v1217, %v1218
        %1261 = vadd.xlane.f32.xlu0 %v1260
        %v1262 = vpop.xlane.xlu0 %1261
        %v1263 = vadd.f32 %v1219, %v1220
        %1264 = vadd.xlane.f32.xlu0 %v1263
        %v1265 = vpop.xlane.xlu0 %1264
        %v1266 = vadd.f32 %v1221, %v1222
        %1267 = vadd.xlane.f32.xlu0 %v1266
        %v1268 = vpop.xlane.xlu0 %1267
        %v1269 = vadd.f32 %v1223, %v1224
        %1270 = vadd.xlane.f32.xlu0 %v1269
        %v1271 = vpop.xlane.xlu0 %1270
        %v1272 = vadd.f32 %v1225, %v1226
        %1273 = vadd.xlane.f32.xlu0 %v1272
        %v1274 = vpop.xlane.xlu0 %1273
        %v1275 = vrcp.pop %v1229
        %v1276 = vrcp.pop %v1232
        %v1277 = vrcp.pop %v1235
        %v1278 = vrcp.pop %v1238
        %v1279 = vrcp.pop %v1241
        %v1280 = vrcp.pop %v1244
        %v1281 = vrcp.pop %v1247
        %v1282 = vrcp.pop %v1250
        %v1283 = vrcp.pop %v1253
        %v1284 = vrcp.pop %v1256
        %v1285 = vrcp.pop %v1259
        %v1286 = vrcp.pop %v1262
        %v1287 = vrcp.pop %v1265
        %v1288 = vrcp.pop %v1268
        %v1289 = vrcp.pop %v1271
        %v1290 = vrcp.pop %v1274
        %v1291 = vmul.f32 %v1195, %v1275
        %v1292 = vmul.f32 %v1196, %v1275
        %v1293 = vmul.f32 %v1197, %v1276
        %v1294 = vmul.f32 %v1198, %v1276
        %v1295 = vmul.f32 %v1199, %v1277
        %v1296 = vmul.f32 %v1200, %v1277
        %v1297 = vmul.f32 %v1201, %v1278
        %v1298 = vmul.f32 %v1202, %v1278
        %v1299 = vmul.f32 %v1203, %v1279
        %v1300 = vmul.f32 %v1204, %v1279
        %v1301 = vmul.f32 %v1205, %v1280
        %v1302 = vmul.f32 %v1206, %v1280
        %v1303 = vmul.f32 %v1207, %v1281
        %v1304 = vmul.f32 %v1208, %v1281
        %v1305 = vmul.f32 %v1209, %v1282
        %v1306 = vmul.f32 %v1210, %v1282
        %v1307 = vmul.f32 %v1211, %v1283
        %v1308 = vmul.f32 %v1212, %v1283
        %v1309 = vmul.f32 %v1213, %v1284
        %v1310 = vmul.f32 %v1214, %v1284
        %v1311 = vmul.f32 %v1215, %v1285
        %v1312 = vmul.f32 %v1216, %v1285
        %v1313 = vmul.f32 %v1217, %v1286
        %v1314 = vmul.f32 %v1218, %v1286
        %v1315 = vmul.f32 %v1219, %v1287
        %v1316 = vmul.f32 %v1220, %v1287
        %v1317 = vmul.f32 %v1221, %v1288
        %v1318 = vmul.f32 %v1222, %v1288
        %v1319 = vmul.f32 %v1223, %v1289
        %v1320 = vmul.f32 %v1224, %v1289
        %v1321 = vmul.f32 %v1225, %v1290
        %v1322 = vmul.f32 %v1226, %v1290
        %v1323 = vpack.c.bf16 %v1293, %v1291
        %v1324 = vpack.c.bf16 %v1294, %v1292
        %v1325 = vpack.c.bf16 %v1297, %v1295
        %v1326 = vpack.c.bf16 %v1298, %v1296
        %v1327 = vpack.c.bf16 %v1301, %v1299
        %v1328 = vpack.c.bf16 %v1302, %v1300
        %v1329 = vpack.c.bf16 %v1305, %v1303
        %v1330 = vpack.c.bf16 %v1306, %v1304
        %v1331 = vpack.c.bf16 %v1309, %v1307
        %v1332 = vpack.c.bf16 %v1310, %v1308
        %v1333 = vpack.c.bf16 %v1313, %v1311
        %v1334 = vpack.c.bf16 %v1314, %v1312
        %v1335 = vpack.c.bf16 %v1317, %v1315
        %v1336 = vpack.c.bf16 %v1318, %v1316
        %v1337 = vpack.c.bf16 %v1321, %v1319
        %v1338 = vpack.c.bf16 %v1322, %v1320
        %v1339 = vpack.c.bf16 %v977, %v973
        %v1340 = vpack.c.bf16 %v979, %v975
        %v1341 = vpack.c.bf16 %v987, %v983
        %v1342 = vpack.c.bf16 %v989, %v985
        %v1343 = vpack.c.bf16 %v997, %v993
        %v1344 = vpack.c.bf16 %v999, %v995
        %v1345 = vpack.c.bf16 %v1007, %v1003
        %v1346 = vpack.c.bf16 %v1009, %v1005
        %v1347 = vpack.c.bf16 %v1017, %v1013
        %v1348 = vpack.c.bf16 %v1019, %v1015
        %v1349 = vpack.c.bf16 %v1027, %v1023
        %v1350 = vpack.c.bf16 %v1029, %v1025
        %v1351 = vpack.c.bf16 %v1037, %v1033
        %v1352 = vpack.c.bf16 %v1039, %v1035
        %v1353 = vpack.c.bf16 %v1047, %v1043
        %v1354 = vpack.c.bf16 %v1049, %v1045
        %1355 = vmatprep.subr.bf16.mxu0 %v1340
        %1356 = vmatpush1.bf16.xpose.msra.mxu0 %v1339
        %1357 = vmatprep.subr.bf16.mxu0 %v1342
        %1358 = vmatpush1.bf16.xpose.msra.mxu0 %v1341
        %1359 = vmatprep.subr.bf16.mxu0 %v1344
        %1360 = vmatpush1.bf16.xpose.msra.mxu0 %v1343
        %1361 = vmatprep.subr.bf16.mxu0 %v1346
        %1362 = vmatpush1.bf16.xpose.msra.mxu0 %v1345
        %1363 = vmatprep.subr.bf16.mxu0 %v1348
        %1364 = vmatpush1.bf16.xpose.msra.mxu0 %v1347
        %1365 = vmatprep.subr.bf16.mxu0 %v1350
        %1366 = vmatpush1.bf16.xpose.msra.mxu0 %v1349
        %1367 = vmatprep.subr.bf16.mxu0 %v1352
        %1368 = vmatpush1.bf16.xpose.msra.mxu0 %v1351
        %1369 = vmatprep.subr.bf16.mxu0 %v1354
        %1370 = vmatpush1.bf16.xpose.msra.mxu0 %v1353
        %1371 = vmatprep.subr.bf16.mxu0 0
        %1372 = vmatpush1.bf16.xpose.msra.mxu0 0
        %1373 = vmatprep.subr.bf16.mxu0 0
        %1374 = vmatpush1.bf16.xpose.msra.mxu0 0
        %1375 = vmatprep.subr.bf16.mxu0 0
        %1376 = vmatpush1.bf16.xpose.msra.mxu0 0
        %1377 = vmatprep.subr.bf16.mxu0 0
        %1378 = vmatpush1.bf16.xpose.msra.mxu0 0
        %1379 = vmatprep.subr.bf16.mxu0 0
        %1380 = vmatpush1.bf16.xpose.msra.mxu0 0
        %1381 = vmatprep.subr.bf16.mxu0 0
        %1382 = vmatpush1.bf16.xpose.msra.mxu0 0
        %1383 = vmatprep.subr.bf16.mxu0 0
        %1384 = vmatpush1.bf16.xpose.msra.mxu0 0
        %1385 = vmatprep.subr.bf16.mxu0 0
        %1386 = vmatpush1.bf16.xpose.msra.mxu0 0
        %1387 = vmatprep.mubr.bf16.mxu0 %v1324
        %1388 = vmatmul.mubr.bf16.gmra.mrb[0].mxu0 %v1323
        %v1389 = vpop.f32.mrb[0].mxu0
        %v1390 = vadd.f32 0.0, %v1389
        %v1391 = vpop.f32.mrb[0].mxu0
        %v1392 = vpop.f32.mrb[0].mxu0
        %v1393 = vadd.f32 0.0, %v1392
        %v1394 = vpop.f32.mrb[0].mxu0
        %1395 = vmatprep.mubr.bf16.mxu0 %v1326
        %1396 = vmatmul.mubr.bf16.gmra.mrb[0].mxu0 %v1325
        %v1397 = vpop.f32.mrb[0].mxu0
        %v1398 = vadd.f32 0.0, %v1397
        %v1399 = vpop.f32.mrb[0].mxu0
        %v1400 = vpop.f32.mrb[0].mxu0
        %v1401 = vadd.f32 0.0, %v1400
        %v1402 = vpop.f32.mrb[0].mxu0
        %1403 = vmatprep.mubr.bf16.mxu0 %v1328
        %1404 = vmatmul.mubr.bf16.gmra.mrb[0].mxu0 %v1327
        %v1405 = vpop.f32.mrb[0].mxu0
        %v1406 = vadd.f32 0.0, %v1405
        %v1407 = vpop.f32.mrb[0].mxu0
        %v1408 = vpop.f32.mrb[0].mxu0
        %v1409 = vadd.f32 0.0, %v1408
        %v1410 = vpop.f32.mrb[0].mxu0
        %1411 = vmatprep.mubr.bf16.mxu0 %v1330
        %1412 = vmatmul.mubr.bf16.gmra.mrb[0].mxu0 %v1329
        %v1413 = vpop.f32.mrb[0].mxu0
        %v1414 = vadd.f32 0.0, %v1413
        %v1415 = vpop.f32.mrb[0].mxu0
        %v1416 = vpop.f32.mrb[0].mxu0
        %v1417 = vadd.f32 0.0, %v1416
        %v1418 = vpop.f32.mrb[0].mxu0
        %1419 = vmatprep.mubr.bf16.mxu0 %v1332
        %1420 = vmatmul.mubr.bf16.gmra.mrb[0].mxu0 %v1331
        %v1421 = vpop.f32.mrb[0].mxu0
        %v1422 = vadd.f32 0.0, %v1421
        %v1423 = vpop.f32.mrb[0].mxu0
        %v1424 = vpop.f32.mrb[0].mxu0
        %v1425 = vadd.f32 0.0, %v1424
        %v1426 = vpop.f32.mrb[0].mxu0
        %1427 = vmatprep.mubr.bf16.mxu0 %v1334
        %1428 = vmatmul.mubr.bf16.gmra.mrb[0].mxu0 %v1333
        %v1429 = vpop.f32.mrb[0].mxu0
        %v1430 = vadd.f32 0.0, %v1429
        %v1431 = vpop.f32.mrb[0].mxu0
        %v1432 = vpop.f32.mrb[0].mxu0
        %v1433 = vadd.f32 0.0, %v1432
        %v1434 = vpop.f32.mrb[0].mxu0
        %1435 = vmatprep.mubr.bf16.mxu0 %v1336
        %1436 = vmatmul.mubr.bf16.gmra.mrb[0].mxu0 %v1335
        %v1437 = vpop.f32.mrb[0].mxu0
        %v1438 = vadd.f32 0.0, %v1437
        %v1439 = vpop.f32.mrb[0].mxu0
        %v1440 = vpop.f32.mrb[0].mxu0
        %v1441 = vadd.f32 0.0, %v1440
        %v1442 = vpop.f32.mrb[0].mxu0
        %1443 = vmatprep.mubr.bf16.mxu0 %v1338
        %1444 = vmatmul.mubr.bf16.gmra.mrb[0].mxu0 %v1337
        %v1445 = vpop.f32.mrb[0].mxu0
        %v1446 = vadd.f32 0.0, %v1445
        %v1447 = vpop.f32.mrb[0].mxu0
        %v1448 = vpop.f32.mrb[0].mxu0
        %v1449 = vadd.f32 0.0, %v1448
        %v1450 = vpop.f32.mrb[0].mxu0
        %1451 = vdwg.mxu0
        %v1452 = vld [vmem:[#allocation16] sm:$0xff]
        %v1453 = vld [vmem:[#allocation16 + $0x8] sm:$0xff]
        %v1454 = vld [vmem:[#allocation16 + $0x10] sm:$0xff]
        %v1455 = vld [vmem:[#allocation16 + $0x18] sm:$0xff]
        %v1456 = vld [vmem:[#allocation16 + $0x20] sm:$0xff]
        %v1457 = vld [vmem:[#allocation16 + $0x28] sm:$0xff]
        %v1458 = vld [vmem:[#allocation16 + $0x30] sm:$0xff]
        %v1459 = vld [vmem:[#allocation16 + $0x38] sm:$0xff]
        %v1460 = vld [vmem:[#allocation16 + $0x40] sm:$0xff]
        %v1461 = vld [vmem:[#allocation16 + $0x48] sm:$0xff]
        %v1462 = vld [vmem:[#allocation16 + $0x50] sm:$0xff]
        %v1463 = vld [vmem:[#allocation16 + $0x58] sm:$0xff]
        %v1464 = vld [vmem:[#allocation16 + $0x60] sm:$0xff]
        %v1465 = vld [vmem:[#allocation16 + $0x68] sm:$0xff]
        %v1466 = vld [vmem:[#allocation16 + $0x70] sm:$0xff]
        %v1467 = vld [vmem:[#allocation16 + $0x78] sm:$0xff]
        %v1468 = vmul.f32 %v1390, %v1452
        %v1469 = vmul.f32 %v1393, %v1453
        %v1470 = vmul.f32 %v1398, %v1454
        %v1471 = vmul.f32 %v1401, %v1455
        %v1472 = vmul.f32 %v1406, %v1456
        %v1473 = vmul.f32 %v1409, %v1457
        %v1474 = vmul.f32 %v1414, %v1458
        %v1475 = vmul.f32 %v1417, %v1459
        %v1476 = vmul.f32 %v1422, %v1460
        %v1477 = vmul.f32 %v1425, %v1461
        %v1478 = vmul.f32 %v1430, %v1462
        %v1479 = vmul.f32 %v1433, %v1463
        %v1480 = vmul.f32 %v1438, %v1464
        %v1481 = vmul.f32 %v1441, %v1465
        %v1482 = vmul.f32 %v1446, %v1466
        %v1483 = vmul.f32 %v1449, %v1467
        %v1484 = vmax.f32 %v587, %v591
        %v1485 = vmax.f32 %v1484, %v597
        %v1486 = vmax.f32 %v1485, %v601
        %v1487 = vrot.slane %v1486, 4
        %v1488 = vmax.f32 %v1486, %v1487
        %v1489 = vrot.slane %v1488, 2
        %v1490 = vmax.f32 %v1488, %v1489
        %v1491 = vrot.slane %v1490, 1
        %v1492 = vmax.f32 %v1490, %v1491
        %v1493 = vmax.f32 %v589, %v593
        %v1494 = vmax.f32 %v1493, %v599
        %v1495 = vmax.f32 %v1494, %v603
        %v1496 = vrot.slane %v1495, 4
        %v1497 = vmax.f32 %v1495, %v1496
        %v1498 = vrot.slane %v1497, 2
        %v1499 = vmax.f32 %v1497, %v1498
        %v1500 = vrot.slane %v1499, 1
        %v1501 = vmax.f32 %v1499, %v1500
        %v1502 = vmax.f32 %v607, %v611
        %v1503 = vmax.f32 %v1502, %v617
        %v1504 = vmax.f32 %v1503, %v621
        %v1505 = vrot.slane %v1504, 4
        %v1506 = vmax.f32 %v1504, %v1505
        %v1507 = vrot.slane %v1506, 2
        %v1508 = vmax.f32 %v1506, %v1507
        %v1509 = vrot.slane %v1508, 1
        %v1510 = vmax.f32 %v1508, %v1509
        %v1511 = vmax.f32 %v609, %v613
        %v1512 = vmax.f32 %v1511, %v619
        %v1513 = vmax.f32 %v1512, %v623
        %v1514 = vrot.slane %v1513, 4
        %v1515 = vmax.f32 %v1513, %v1514
        %v1516 = vrot.slane %v1515, 2
        %v1517 = vmax.f32 %v1515, %v1516
        %v1518 = vrot.slane %v1517, 1
        %v1519 = vmax.f32 %v1517, %v1518
        %v1520 = vmax.f32 %v627, %v631
        %v1521 = vmax.f32 %v1520, %v637
        %v1522 = vmax.f32 %v1521, %v641
        %v1523 = vrot.slane %v1522, 4
        %v1524 = vmax.f32 %v1522, %v1523
        %v1525 = vrot.slane %v1524, 2
        %v1526 = vmax.f32 %v1524, %v1525
        %v1527 = vrot.slane %v1526, 1
        %v1528 = vmax.f32 %v1526, %v1527
        %v1529 = vmax.f32 %v629, %v633
        %v1530 = vmax.f32 %v1529, %v639
        %v1531 = vmax.f32 %v1530, %v643
        %v1532 = vrot.slane %v1531, 4
        %v1533 = vmax.f32 %v1531, %v1532
        %v1534 = vrot.slane %v1533, 2
        %v1535 = vmax.f32 %v1533, %v1534
        %v1536 = vrot.slane %v1535, 1
        %v1537 = vmax.f32 %v1535, %v1536
        %v1538 = vmax.f32 %v647, %v651
        %v1539 = vmax.f32 %v1538, %v657
        %v1540 = vmax.f32 %v1539, %v661
        %v1541 = vrot.slane %v1540, 4
        %v1542 = vmax.f32 %v1540, %v1541
        %v1543 = vrot.slane %v1542, 2
        %v1544 = vmax.f32 %v1542, %v1543
        %v1545 = vrot.slane %v1544, 1
        %v1546 = vmax.f32 %v1544, %v1545
        %v1547 = vmax.f32 %v649, %v653
        %v1548 = vmax.f32 %v1547, %v659
        %v1549 = vmax.f32 %v1548, %v663
        %v1550 = vrot.slane %v1549, 4
        %v1551 = vmax.f32 %v1549, %v1550
        %v1552 = vrot.slane %v1551, 2
        %v1553 = vmax.f32 %v1551, %v1552
        %v1554 = vrot.slane %v1553, 1
        %v1555 = vmax.f32 %v1553, %v1554
        %v1556 = vsub.f32 %v587, %v1492
        %v1557 = vsub.f32 %v589, %v1501
        %v1558 = vsub.f32 %v591, %v1492
        %v1559 = vsub.f32 %v593, %v1501
        %v1560 = vsub.f32 %v597, %v1492
        %v1561 = vsub.f32 %v599, %v1501
        %v1562 = vsub.f32 %v601, %v1492
        %v1563 = vsub.f32 %v603, %v1501
        %v1564 = vsub.f32 %v607, %v1510
        %v1565 = vsub.f32 %v609, %v1519
        %v1566 = vsub.f32 %v611, %v1510
        %v1567 = vsub.f32 %v613, %v1519
        %v1568 = vsub.f32 %v617, %v1510
        %v1569 = vsub.f32 %v619, %v1519
        %v1570 = vsub.f32 %v621, %v1510
        %v1571 = vsub.f32 %v623, %v1519
        %v1572 = vsub.f32 %v627, %v1528
        %v1573 = vsub.f32 %v629, %v1537
        %v1574 = vsub.f32 %v631, %v1528
        %v1575 = vsub.f32 %v633, %v1537
        %v1576 = vsub.f32 %v637, %v1528
        %v1577 = vsub.f32 %v639, %v1537
        %v1578 = vsub.f32 %v641, %v1528
        %v1579 = vsub.f32 %v643, %v1537
        %v1580 = vsub.f32 %v647, %v1546
        %v1581 = vsub.f32 %v649, %v1555
        %v1582 = vsub.f32 %v651, %v1546
        %v1583 = vsub.f32 %v653, %v1555
        %v1584 = vsub.f32 %v657, %v1546
        %v1585 = vsub.f32 %v659, %v1555
        %v1586 = vsub.f32 %v661, %v1546
        %v1587 = vsub.f32 %v663, %v1555
        %v1588 = vpack.c.bf16 %v1558, %v1556
        %v1589 = vpack.c.bf16 %v1559, %v1557
        %v1590 = vpack.c.bf16 %v1562, %v1560
        %v1591 = vpack.c.bf16 %v1563, %v1561
        %v1592 = vpack.c.bf16 %v1566, %v1564
        %v1593 = vpack.c.bf16 %v1567, %v1565
        %v1594 = vpack.c.bf16 %v1570, %v1568
        %v1595 = vpack.c.bf16 %v1571, %v1569
        %v1596 = vpack.c.bf16 %v1574, %v1572
        %v1597 = vpack.c.bf16 %v1575, %v1573
        %v1598 = vpack.c.bf16 %v1578, %v1576
        %v1599 = vpack.c.bf16 %v1579, %v1577
        %v1600 = vpack.c.bf16 %v1582, %v1580
        %v1601 = vpack.c.bf16 %v1583, %v1581
        %v1602 = vpack.c.bf16 %v1586, %v1584
        %v1603 = vpack.c.bf16 %v1587, %v1585
        %v1605 = vmul.bf16 %v1588, 1069105081
        %v1606 = vpow.bf16.pop %v1605
        %v1608 = vmul.bf16 %v1589, 1069105081
        %v1609 = vpow.bf16.pop %v1608
        %v1611 = vmul.bf16 %v1590, 1069105081
        %v1612 = vpow.bf16.pop %v1611
        %v1614 = vmul.bf16 %v1591, 1069105081
        %v1615 = vpow.bf16.pop %v1614
        %v1617 = vmul.bf16 %v1592, 1069105081
        %v1618 = vpow.bf16.pop %v1617
        %v1620 = vmul.bf16 %v1593, 1069105081
        %v1621 = vpow.bf16.pop %v1620
        %v1623 = vmul.bf16 %v1594, 1069105081
        %v1624 = vpow.bf16.pop %v1623
        %v1626 = vmul.bf16 %v1595, 1069105081
        %v1627 = vpow.bf16.pop %v1626
        %v1629 = vmul.bf16 %v1596, 1069105081
        %v1630 = vpow.bf16.pop %v1629
        %v1632 = vmul.bf16 %v1597, 1069105081
        %v1633 = vpow.bf16.pop %v1632
        %v1635 = vmul.bf16 %v1598, 1069105081
        %v1636 = vpow.bf16.pop %v1635
        %v1638 = vmul.bf16 %v1599, 1069105081
        %v1639 = vpow.bf16.pop %v1638
        %v1641 = vmul.bf16 %v1600, 1069105081
        %v1642 = vpow.bf16.pop %v1641
        %v1644 = vmul.bf16 %v1601, 1069105081
        %v1645 = vpow.bf16.pop %v1644
        %v1647 = vmul.bf16 %v1602, 1069105081
        %v1648 = vpow.bf16.pop %v1647
        %v1650 = vmul.bf16 %v1603, 1069105081
        %v1651 = vpow.bf16.pop %v1650
        %v1652 = vunpack.c.l.bf16 %v1606
        %v1653 = vunpack.c.l.bf16 %v1609
        %v1654 = vunpack.c.h.bf16 %v1606
        %v1655 = vunpack.c.h.bf16 %v1609
        %v1656 = vunpack.c.l.bf16 %v1612
        %v1657 = vunpack.c.l.bf16 %v1615
        %v1658 = vunpack.c.h.bf16 %v1612
        %v1659 = vunpack.c.h.bf16 %v1615
        %v1660 = vunpack.c.l.bf16 %v1618
        %v1661 = vunpack.c.l.bf16 %v1621
        %v1662 = vunpack.c.h.bf16 %v1618
        %v1663 = vunpack.c.h.bf16 %v1621
        %v1664 = vunpack.c.l.bf16 %v1624
        %v1665 = vunpack.c.l.bf16 %v1627
        %v1666 = vunpack.c.h.bf16 %v1624
        %v1667 = vunpack.c.h.bf16 %v1627
        %v1668 = vunpack.c.l.bf16 %v1630
        %v1669 = vunpack.c.l.bf16 %v1633
        %v1670 = vunpack.c.h.bf16 %v1630
        %v1671 = vunpack.c.h.bf16 %v1633
        %v1672 = vunpack.c.l.bf16 %v1636
        %v1673 = vunpack.c.l.bf16 %v1639
        %v1674 = vunpack.c.h.bf16 %v1636
        %v1675 = vunpack.c.h.bf16 %v1639
        %v1676 = vunpack.c.l.bf16 %v1642
        %v1677 = vunpack.c.l.bf16 %v1645
        %v1678 = vunpack.c.h.bf16 %v1642
        %v1679 = vunpack.c.h.bf16 %v1645
        %v1680 = vunpack.c.l.bf16 %v1648
        %v1681 = vunpack.c.l.bf16 %v1651
        %v1682 = vunpack.c.h.bf16 %v1648
        %v1683 = vunpack.c.h.bf16 %v1651
        %v1684 = vadd.f32 %v1652, %v1654
        %v1685 = vadd.f32 %v1684, %v1656
        %v1686 = vadd.f32 %v1685, %v1658
        %v1687 = vrot.slane %v1686, 4
        %v1688 = vadd.f32 %v1686, %v1687
        %v1689 = vrot.slane %v1688, 2
        %v1690 = vadd.f32 %v1688, %v1689
        %v1691 = vrot.slane %v1690, 1
        %v1692 = vadd.f32 %v1690, %v1691
        %v1693 = vadd.f32 %v1653, %v1655
        %v1694 = vadd.f32 %v1693, %v1657
        %v1695 = vadd.f32 %v1694, %v1659
        %v1696 = vrot.slane %v1695, 4
        %v1697 = vadd.f32 %v1695, %v1696
        %v1698 = vrot.slane %v1697, 2
        %v1699 = vadd.f32 %v1697, %v1698
        %v1700 = vrot.slane %v1699, 1
        %v1701 = vadd.f32 %v1699, %v1700
        %v1702 = vadd.f32 %v1660, %v1662
        %v1703 = vadd.f32 %v1702, %v1664
        %v1704 = vadd.f32 %v1703, %v1666
        %v1705 = vrot.slane %v1704, 4
        %v1706 = vadd.f32 %v1704, %v1705
        %v1707 = vrot.slane %v1706, 2
        %v1708 = vadd.f32 %v1706, %v1707
        %v1709 = vrot.slane %v1708, 1
        %v1710 = vadd.f32 %v1708, %v1709
        %v1711 = vadd.f32 %v1661, %v1663
        %v1712 = vadd.f32 %v1711, %v1665
        %v1713 = vadd.f32 %v1712, %v1667
        %v1714 = vrot.slane %v1713, 4
        %v1715 = vadd.f32 %v1713, %v1714
        %v1716 = vrot.slane %v1715, 2
        %v1717 = vadd.f32 %v1715, %v1716
        %v1718 = vrot.slane %v1717, 1
        %v1719 = vadd.f32 %v1717, %v1718
        %v1720 = vadd.f32 %v1668, %v1670
        %v1721 = vadd.f32 %v1720, %v1672
        %v1722 = vadd.f32 %v1721, %v1674
        %v1723 = vrot.slane %v1722, 4
        %v1724 = vadd.f32 %v1722, %v1723
        %v1725 = vrot.slane %v1724, 2
        %v1726 = vadd.f32 %v1724, %v1725
        %v1727 = vrot.slane %v1726, 1
        %v1728 = vadd.f32 %v1726, %v1727
        %v1729 = vadd.f32 %v1669, %v1671
        %v1730 = vadd.f32 %v1729, %v1673
        %v1731 = vadd.f32 %v1730, %v1675
        %v1732 = vrot.slane %v1731, 4
        %v1733 = vadd.f32 %v1731, %v1732
        %v1734 = vrot.slane %v1733, 2
        %v1735 = vadd.f32 %v1733, %v1734
        %v1736 = vrot.slane %v1735, 1
        %v1737 = vadd.f32 %v1735, %v1736
        %v1738 = vadd.f32 %v1676, %v1678
        %v1739 = vadd.f32 %v1738, %v1680
        %v1740 = vadd.f32 %v1739, %v1682
        %v1741 = vrot.slane %v1740, 4
        %v1742 = vadd.f32 %v1740, %v1741
        %v1743 = vrot.slane %v1742, 2
        %v1744 = vadd.f32 %v1742, %v1743
        %v1745 = vrot.slane %v1744, 1
        %v1746 = vadd.f32 %v1744, %v1745
        %v1747 = vadd.f32 %v1677, %v1679
        %v1748 = vadd.f32 %v1747, %v1681
        %v1749 = vadd.f32 %v1748, %v1683
        %v1750 = vrot.slane %v1749, 4
        %v1751 = vadd.f32 %v1749, %v1750
        %v1752 = vrot.slane %v1751, 2
        %v1753 = vadd.f32 %v1751, %v1752
        %v1754 = vrot.slane %v1753, 1
        %v1755 = vadd.f32 %v1753, %v1754
        %v1756 = vrcp.pop %v1692
        %v1757 = vrcp.pop %v1701
        %v1758 = vrcp.pop %v1710
        %v1759 = vrcp.pop %v1719
        %v1760 = vrcp.pop %v1728
        %v1761 = vrcp.pop %v1737
        %v1762 = vrcp.pop %v1746
        %v1763 = vrcp.pop %v1755
        %v1764 = vmul.f32 %v1652, %v1756
        %v1765 = vmul.f32 %v1653, %v1757
        %v1766 = vmul.f32 %v1654, %v1756
        %v1767 = vmul.f32 %v1655, %v1757
        %v1768 = vmul.f32 %v1656, %v1756
        %v1769 = vmul.f32 %v1657, %v1757
        %v1770 = vmul.f32 %v1658, %v1756
        %v1771 = vmul.f32 %v1659, %v1757
        %v1772 = vmul.f32 %v1660, %v1758
        %v1773 = vmul.f32 %v1661, %v1759
        %v1774 = vmul.f32 %v1662, %v1758
        %v1775 = vmul.f32 %v1663, %v1759
        %v1776 = vmul.f32 %v1664, %v1758
        %v1777 = vmul.f32 %v1665, %v1759
        %v1778 = vmul.f32 %v1666, %v1758
        %v1779 = vmul.f32 %v1667, %v1759
        %v1780 = vmul.f32 %v1668, %v1760
        %v1781 = vmul.f32 %v1669, %v1761
        %v1782 = vmul.f32 %v1670, %v1760
        %v1783 = vmul.f32 %v1671, %v1761
        %v1784 = vmul.f32 %v1672, %v1760
        %v1785 = vmul.f32 %v1673, %v1761
        %v1786 = vmul.f32 %v1674, %v1760
        %v1787 = vmul.f32 %v1675, %v1761
        %v1788 = vmul.f32 %v1676, %v1762
        %v1789 = vmul.f32 %v1677, %v1763
        %v1790 = vmul.f32 %v1678, %v1762
        %v1791 = vmul.f32 %v1679, %v1763
        %v1792 = vmul.f32 %v1680, %v1762
        %v1793 = vmul.f32 %v1681, %v1763
        %v1794 = vmul.f32 %v1682, %v1762
        %v1795 = vmul.f32 %v1683, %v1763
        %v1796 = vpack.c.bf16 %v1766, %v1764
        %v1797 = vpack.c.bf16 %v1767, %v1765
        %v1798 = vpack.c.bf16 %v1770, %v1768
        %v1799 = vpack.c.bf16 %v1771, %v1769
        %v1800 = vpack.c.bf16 %v1774, %v1772
        %v1801 = vpack.c.bf16 %v1775, %v1773
        %v1802 = vpack.c.bf16 %v1778, %v1776
        %v1803 = vpack.c.bf16 %v1779, %v1777
        %v1804 = vpack.c.bf16 %v1782, %v1780
        %v1805 = vpack.c.bf16 %v1783, %v1781
        %v1806 = vpack.c.bf16 %v1786, %v1784
        %v1807 = vpack.c.bf16 %v1787, %v1785
        %v1808 = vpack.c.bf16 %v1790, %v1788
        %v1809 = vpack.c.bf16 %v1791, %v1789
        %v1810 = vpack.c.bf16 %v1794, %v1792
        %v1811 = vpack.c.bf16 %v1795, %v1793
        %v1812 = vpack.c.bf16 %v1469, %v1468
        %v1813 = vpack.c.bf16 %v1471, %v1470
        %v1814 = vpack.c.bf16 %v1473, %v1472
        %v1815 = vpack.c.bf16 %v1475, %v1474
        %v1816 = vpack.c.bf16 %v1477, %v1476
        %v1817 = vpack.c.bf16 %v1479, %v1478
        %v1818 = vpack.c.bf16 %v1481, %v1480
        %v1819 = vpack.c.bf16 %v1483, %v1482
        %1820 = vxpose.xlu0.c.b16.start [1/8] %v1812, 128
        %1821 = vxpose.xlu0.c.b16.cont [2/8] %v1813, 128
        %1822 = vxpose.xlu0.c.b16.cont [3/8] %v1814, 128
        %1823 = vxpose.xlu0.c.b16.cont [4/8] %v1815, 128
        %1824 = vxpose.xlu0.c.b16.cont [5/8] %v1816, 128
        %1825 = vxpose.xlu0.c.b16.cont [6/8] %v1817, 128
        %1826 = vxpose.xlu0.c.b16.cont [7/8] %v1818, 128
        %1827 = vxpose.xlu0.c.b16.end [8/8] %v1819, 128
        %v1828 = vpop.trf.xlu0
        %v1829 = vpop.trf.xlu0
        %v1830 = vpop.trf.xlu0
        %v1831 = vpop.trf.xlu0
        %v1832 = vpop.trf.xlu0
        %v1833 = vpop.trf.xlu0
        %v1834 = vpop.trf.xlu0
        %v1835 = vpop.trf.xlu0
        %1836 = vmatprep.subr.bf16.mxu0 %v1797
        %1837 = vmatpush1.bf16.msra.mxu0 %v1796
        %1838 = vmatprep.subr.bf16.mxu0 %v1799
        %1839 = vmatpush1.bf16.msra.mxu0 %v1798
        %1840 = vmatprep.subr.bf16.mxu0 %v1801
        %1841 = vmatpush1.bf16.msra.mxu0 %v1800
        %1842 = vmatprep.subr.bf16.mxu0 %v1803
        %1843 = vmatpush1.bf16.msra.mxu0 %v1802
        %1844 = vmatprep.subr.bf16.mxu0 %v1805
        %1845 = vmatpush1.bf16.msra.mxu0 %v1804
        %1846 = vmatprep.subr.bf16.mxu0 %v1807
        %1847 = vmatpush1.bf16.msra.mxu0 %v1806
        %1848 = vmatprep.subr.bf16.mxu0 %v1809
        %1849 = vmatpush1.bf16.msra.mxu0 %v1808
        %1850 = vmatprep.subr.bf16.mxu0 %v1811
        %1851 = vmatpush1.bf16.msra.mxu0 %v1810
        %1852 = vmatprep.subr.bf16.mxu0 0
        %1853 = vmatpush1.bf16.msra.mxu0 0
        %1854 = vmatprep.subr.bf16.mxu0 0
        %1855 = vmatpush1.bf16.msra.mxu0 0
        %1856 = vmatprep.subr.bf16.mxu0 0
        %1857 = vmatpush1.bf16.msra.mxu0 0
        %1858 = vmatprep.subr.bf16.mxu0 0
        %1859 = vmatpush1.bf16.msra.mxu0 0
        %1860 = vmatprep.subr.bf16.mxu0 0
        %1861 = vmatpush1.bf16.msra.mxu0 0
        %1862 = vmatprep.subr.bf16.mxu0 0
        %1863 = vmatpush1.bf16.msra.mxu0 0
        %1864 = vmatprep.subr.bf16.mxu0 0
        %1865 = vmatpush1.bf16.msra.mxu0 0
        %1866 = vmatprep.subr.bf16.mxu0 0
        %1867 = vmatpush1.bf16.msra.mxu0 0
        %1868 = vmatprep.mubr.bf16.mxu0 0
        %1869 = vmatmul.mubr.bf16.gmra.mrb[0].mxu0 %v1828
        %v1870 = vpop.f32.mrb[0].mxu0
        %v1871 = vadd.f32 0.0, %v1870
        %v1872 = vpop.f32.mrb[0].mxu0
        %v1873 = vadd.f32 0.0, %v1872
        %v1874 = vpop.f32.mrb[0].mxu0
        %v1875 = vadd.f32 0.0, %v1874
        %v1876 = vpop.f32.mrb[0].mxu0
        %v1877 = vadd.f32 0.0, %v1876
        %1878 = vmatprep.mubr.bf16.mxu0 0
        %1879 = vmatmul.mubr.bf16.gmra.mrb[0].mxu0 %v1829
        %v1880 = vpop.f32.mrb[0].mxu0
        %v1881 = vadd.f32 0.0, %v1880
        %v1882 = vpop.f32.mrb[0].mxu0
        %v1883 = vadd.f32 0.0, %v1882
        %v1884 = vpop.f32.mrb[0].mxu0
        %v1885 = vadd.f32 0.0, %v1884
        %v1886 = vpop.f32.mrb[0].mxu0
        %v1887 = vadd.f32 0.0, %v1886
        %1888 = vmatprep.mubr.bf16.mxu0 0
        %1889 = vmatmul.mubr.bf16.gmra.mrb[0].mxu0 %v1830
        %v1890 = vpop.f32.mrb[0].mxu0
        %v1891 = vadd.f32 0.0, %v1890
        %v1892 = vpop.f32.mrb[0].mxu0
        %v1893 = vadd.f32 0.0, %v1892
        %v1894 = vpop.f32.mrb[0].mxu0
        %v1895 = vadd.f32 0.0, %v1894
        %v1896 = vpop.f32.mrb[0].mxu0
        %v1897 = vadd.f32 0.0, %v1896
        %1898 = vmatprep.mubr.bf16.mxu0 0
        %1899 = vmatmul.mubr.bf16.gmra.mrb[0].mxu0 %v1831
        %v1900 = vpop.f32.mrb[0].mxu0
        %v1901 = vadd.f32 0.0, %v1900
        %v1902 = vpop.f32.mrb[0].mxu0
        %v1903 = vadd.f32 0.0, %v1902
        %v1904 = vpop.f32.mrb[0].mxu0
        %v1905 = vadd.f32 0.0, %v1904
        %v1906 = vpop.f32.mrb[0].mxu0
        %v1907 = vadd.f32 0.0, %v1906
        %1908 = vmatprep.mubr.bf16.mxu0 0
        %1909 = vmatmul.mubr.bf16.gmra.mrb[0].mxu0 %v1832
        %v1910 = vpop.f32.mrb[0].mxu0
        %v1911 = vadd.f32 0.0, %v1910
        %v1912 = vpop.f32.mrb[0].mxu0
        %v1913 = vadd.f32 0.0, %v1912
        %v1914 = vpop.f32.mrb[0].mxu0
        %v1915 = vadd.f32 0.0, %v1914
        %v1916 = vpop.f32.mrb[0].mxu0
        %v1917 = vadd.f32 0.0, %v1916
        %1918 = vmatprep.mubr.bf16.mxu0 0
        %1919 = vmatmul.mubr.bf16.gmra.mrb[0].mxu0 %v1833
        %v1920 = vpop.f32.mrb[0].mxu0
        %v1921 = vadd.f32 0.0, %v1920
        %v1922 = vpop.f32.mrb[0].mxu0
        %v1923 = vadd.f32 0.0, %v1922
        %v1924 = vpop.f32.mrb[0].mxu0
        %v1925 = vadd.f32 0.0, %v1924
        %v1926 = vpop.f32.mrb[0].mxu0
        %v1927 = vadd.f32 0.0, %v1926
        %1928 = vmatprep.mubr.bf16.mxu0 0
        %1929 = vmatmul.mubr.bf16.gmra.mrb[0].mxu0 %v1834
        %v1930 = vpop.f32.mrb[0].mxu0
        %v1931 = vadd.f32 0.0, %v1930
        %v1932 = vpop.f32.mrb[0].mxu0
        %v1933 = vadd.f32 0.0, %v1932
        %v1934 = vpop.f32.mrb[0].mxu0
        %v1935 = vadd.f32 0.0, %v1934
        %v1936 = vpop.f32.mrb[0].mxu0
        %v1937 = vadd.f32 0.0, %v1936
        %1938 = vmatprep.mubr.bf16.mxu0 0
        %1939 = vmatmul.mubr.bf16.gmra.mrb[0].mxu0 %v1835
        %v1940 = vpop.f32.mrb[0].mxu0
        %v1941 = vadd.f32 0.0, %v1940
        %v1942 = vpop.f32.mrb[0].mxu0
        %v1943 = vadd.f32 0.0, %v1942
        %v1944 = vpop.f32.mrb[0].mxu0
        %v1945 = vadd.f32 0.0, %v1944
        %v1946 = vpop.f32.mrb[0].mxu0
        %v1947 = vadd.f32 0.0, %v1946
        %1948 = vdwg.mxu0
        %v1949 = vld [vmem:[#allocation10] sm:$0x3]
        %v1950 = vpack.c.bf16 %v1875, %v1871
        %v1951 = vpack.c.bf16 %v1877, %v1873
        %v1952 = vpack.c.bf16 %v1885, %v1881
        %v1953 = vpack.c.bf16 %v1887, %v1883
        %v1954 = vpack.c.bf16 %v1895, %v1891
        %v1955 = vpack.c.bf16 %v1897, %v1893
        %v1956 = vpack.c.bf16 %v1905, %v1901
        %v1957 = vpack.c.bf16 %v1907, %v1903
        %v1958 = vpack.c.bf16 %v1915, %v1911
        %v1959 = vpack.c.bf16 %v1917, %v1913
        %v1960 = vpack.c.bf16 %v1925, %v1921
        %v1961 = vpack.c.bf16 %v1927, %v1923
        %v1962 = vpack.c.bf16 %v1935, %v1931
        %v1963 = vpack.c.bf16 %v1937, %v1933
        %v1964 = vpack.c.bf16 %v1945, %v1941
        %v1965 = vpack.c.bf16 %v1947, %v1943
        %v1966 = vld [vmem:[#allocation11] sm:$0xf]
        %1968 = vset.pattern.permute.xlu0 0
        %1969 = vperm.xlu0 %1968, %v1966
        %v1970 = vpop.permute.xlu0 %1969
        %1972 = vmatprep.subr.bf16.mxu0 %v1951
        %1973 = vmatpush1.bf16.msra.mxu0 %v1950
        %1974 = vmatprep.subr.bf16.mxu0 %v1953
        %1975 = vmatpush1.bf16.msra.mxu0 %v1952
        %1976 = vmatprep.subr.bf16.mxu0 %v1955
        %1977 = vmatpush1.bf16.msra.mxu0 %v1954
        %1978 = vmatprep.subr.bf16.mxu0 %v1957
        %1979 = vmatpush1.bf16.msra.mxu0 %v1956
        %1980 = vmatprep.subr.bf16.mxu0 %v1959
        %1981 = vmatpush1.bf16.msra.mxu0 %v1958
        %1982 = vmatprep.subr.bf16.mxu0 %v1961
        %1983 = vmatpush1.bf16.msra.mxu0 %v1960
        %1984 = vmatprep.subr.bf16.mxu0 %v1963
        %1985 = vmatpush1.bf16.msra.mxu0 %v1962
        %1986 = vmatprep.subr.bf16.mxu0 %v1965
        %1987 = vmatpush1.bf16.msra.mxu0 %v1964
        %1988 = vmatprep.subr.bf16.mxu0 0
        %1989 = vmatpush1.bf16.msra.mxu0 0
        %1990 = vmatprep.subr.bf16.mxu0 0
        %1991 = vmatpush1.bf16.msra.mxu0 0
        %1992 = vmatprep.subr.bf16.mxu0 0
        %1993 = vmatpush1.bf16.msra.mxu0 0
        %1994 = vmatprep.subr.bf16.mxu0 0
        %1995 = vmatpush1.bf16.msra.mxu0 0
        %1996 = vmatprep.subr.bf16.mxu0 0
        %1997 = vmatpush1.bf16.msra.mxu0 0
        %1998 = vmatprep.subr.bf16.mxu0 0
        %1999 = vmatpush1.bf16.msra.mxu0 0
        %2000 = vmatprep.subr.bf16.mxu0 0
        %2001 = vmatpush1.bf16.msra.mxu0 0
        %2002 = vmatprep.subr.bf16.mxu0 0
        %2003 = vmatpush1.bf16.msra.mxu0 0
        %2004 = vmatprep.mubr.bf16.mxu0 0
        %2005 = vmatmul.mubr.bf16.gmra.mrb[0].mxu0 %v1949
        %v2006 = vpop.f32.mrb[0].mxu0
        %v2007 = vadd.f32 %v1970, %v2006
        %v2008 = vpop.f32.mrb[0].mxu0
        %v2009 = vadd.f32 %v1970, %v2008
        %v2010 = vpop.f32.mrb[0].mxu0
        %v2011 = vpop.f32.mrb[0].mxu0
        %2012 = vdwg.mxu0
        %vm2013 = vcmask 1043456
        %v2014 = vsel %vm2013, %v2007, 0.0
        %v2015 = vsel %vm2013, %v2009, 0.0
        %v2016 = vadd.f32 %v2014, %v2015
        %2017 = vadd.xlane.f32.xlu0 %v2016
        %v2018 = vpop.xlane.xlu0 %2017
        %v2019 = vrot.slane %v2018, 4
        %v2020 = vadd.f32 %v2018, %v2019
        %v2021 = vrot.slane %v2020, 2
        %v2022 = vadd.f32 %v2020, %v2021
        %v2023 = vrot.slane %v2022, 1
        %v2024 = vadd.f32 %v2022, %v2023
        %s2025 = vtos %v2024
        %v2026 = vmul.f32 %v2007, %v2007
        %v2027 = vmul.f32 %v2009, %v2009
        %v2028 = vsel %vm2013, %v2026, 0.0
        %v2029 = vsel %vm2013, %v2027, 0.0
        %v2030 = vadd.f32 %v2028, %v2029
        %2031 = vadd.xlane.f32.xlu0 %v2030
        %v2032 = vpop.xlane.xlu0 %2031
        %v2033 = vrot.slane %v2032, 4
        %v2034 = vadd.f32 %v2032, %v2033
        %v2035 = vrot.slane %v2034, 2
        %v2036 = vadd.f32 %v2034, %v2035
        %v2037 = vrot.slane %v2036, 1
        %v2038 = vadd.f32 %v2036, %v2037
        %s2039 = vtos %v2038
        %v2040 = vrcp.pop 1024.0
        %s2041 = vtos %v2040
        %s2042 = smul.f32 %s2025, %s2041
        %v2043 = vrcp.pop 1024.0
        %s2044 = vtos %v2043
        %s2045 = smul.f32 %s2039, %s2044
        %s2046 = smul.f32 %s2042, %s2042
        %s2047 = ssub.f32 %s2045, %s2046
        %s2048 = smax.f32 %s2047, 0.0
        %s2049 = sadd.f32 %s2048, 1e-05
        %v2050 = vstv %s2049
        %v2051 = vrsqrt.pop %v2050
        %s2052 = vtos %v2051
        %v2053 = vld [vmem:[#allocation13] sm:$0xf]
        %v2054 = vstv %s2052
        %v2055 = vmul.f32 %v2053, %v2054
        %v2056 = vld [vmem:[#allocation14] sm:$0xf]
        %v2057 = vstv %s2042
        %v2058 = vmul.f32 %v2057, %v2055
        %v2059 = vsub.f32 %v2056, %v2058
        %2061 = vset.pattern.permute.xlu0 0
        %2062 = vperm.xlu0 %2061, %v2055
        %v2063 = vpop.permute.xlu0 %2062
        %v2065 = vmul.f32 %v2007, %v2063
        %v2066 = vmul.f32 %v2009, %v2063
        %2068 = vset.pattern.permute.xlu0 0
        %2069 = vperm.xlu0 %2068, %v2059
        %v2070 = vpop.permute.xlu0 %2069
        %v2072 = vadd.f32 %v2065, %v2070
        %v2073 = vadd.f32 %v2066, %v2070
        %v2076 = vcombine.low %v2072, %v2073
        %2078 = vst [vmem:[%s456] sm:$0xff] %v2076
        %s2079 = sand.u32 %s232, 1
        %s2080 = scalar_lea.sflag [#allocation4], %s2079
        %s2081 = sand.u32 %s232, 1
        %s2082 = smul.addr %s2081, 8
        %s2083 = scalar_lea.vmem [#allocation17], %s2082
        // Predicated region
        $region93: #{tpu_custom_call.1} parent=55 // pred_check
          %p2084 = pneg %p242
        $region94: #{tpu_custom_call.1} parent=55 // pred_check_branch
          %2086 = sbr.rel (%p2084) target = $region96
        $region95: #{tpu_custom_call.1} parent=55 // pred_region
          %s2088 = ssub.s32 128, 128
          %2089 = vsyncadd %s2080, %s2088
          %s2090 = smul.addr %s30, 2
          %s2091 = smul.addr %s2090, 64
          %s2092 = scalar_lea.hbm %s9, %s2091
          %s2094 = sshll.u32 %s2083, 4
          %s2095 = int_to_ptr.vmem [resolvable:$true] %s2094
          %2097 = dma.vmem_to_hbm [thread:$0]  %s2095, 128, %s2092, %s2080
        $region96: #{tpu_custom_call.1} parent=55 // pred_fallthru
          _
      $region56: #{tpu_custom_call.1} parent=5 // pred_fallthru
        _
      %p2098 = scmp.le.s32.totalorder 2, %s25
      // Predicated region
      $region97: #{tpu_custom_call.1} parent=5 // pred_check
        %p2099 = pneg %p2098
      $region98: #{tpu_custom_call.1} parent=5 // pred_check_branch
        %2101 = sbr.rel (%p2099) target = $region100
      $region99: #{tpu_custom_call.1} parent=5 // pred_region
        %s2102 = ssub.s32 %s25, 2
        // Predicated region
        $region101: #{tpu_custom_call.1} parent=99 // pred_check
          %p2103 = pneg %p248
        $region102: #{tpu_custom_call.1} parent=99 // pred_check_branch
          %2105 = sbr.rel (%p2103) target = $region104
        $region103: #{tpu_custom_call.1} parent=99 // pred_region
          %s2106 = sand.u32 %s233, 1
          %s2107 = scalar_lea.sflag [#allocation4], %s2106
          %s2108 = sand.u32 %s233, 1
          %s2109 = smul.addr %s2108, 8
          %s2110 = scalar_lea.vmem [#allocation17], %s2109
          %2111 = dma.done %s2107, 128
        $region104: #{tpu_custom_call.1} parent=99 // pred_fallthru
          _
      $region100: #{tpu_custom_call.1} parent=5 // pred_fallthru
        _
    $region6: #{tpu_custom_call.1} parent=1 // loop_footer
      %s29 = sadd.s32 1, %s25
    $region7: #{tpu_custom_call.1} parent=1 // loop_footer_branch
      %24 = sbr.rel target = $region3
    $region8: #{tpu_custom_call.1} parent=1 // loop_exit
      _
    %2112 = vsyncpa [#allocation3], 1
    %s2113 = scalar_lea.sflag [#allocation3], 1
    %2114 = vsyncpa %s2113, 1
    %2115 = vsyncpa [#allocation6], 1
    %2116 = vsyncpa [#allocation9], 1
    %2117 = vsyncpa [#allocation12], 1
    %2118 = vsyncpa [#allocation15], 1
    %2119 = vsyncpa [#allocation4], 1
    %s2120 = scalar_lea.sflag [#allocation4], 1
    %2121 = vsyncpa %s2120, 1

</llo_original>
